<compile_context>
chip_gen: v5e
topology: v5e:2x2
jax: 0.10.0
libtpu: 0.0.40
codegen_flags: <defaults>
</compile_context>

<pallas_src>
import jax
import jax.numpy as jnp
from jax.experimental import pallas as pl
from jax.experimental.pallas import tpu as pltpu

IMG_SIZE = 16
IN_DIM = IMG_SIZE * IMG_SIZE * 3   # 768
H1 = 512
H2 = 128
OUT = 1


def mlp_kernel(x_ref, w1_ref, b1_ref, w2_ref, b2_ref, w3_ref, b3_ref, o_ref):
    # In-kernel bf16 cast of the f32 x tile (hides under the MXU; avoids a
    # separate wrapper-side HBM cast pass).
    xb = x_ref[...].astype(jnp.bfloat16)
    # Layer 1: (TB, 768) bf16 @ (768, 512) bf16 -> f32 accumulate; bias + ReLU in f32.
    h1 = jnp.dot(xb, w1_ref[...], preferred_element_type=jnp.float32)
    h1 = jnp.maximum(h1 + b1_ref[...], 0.0)
    # Layer 2: (TB, 512) bf16 @ (512, 128) bf16 -> f32 accumulate; bias + ReLU in f32.
    h2 = jnp.dot(h1.astype(jnp.bfloat16), w2_ref[...],
                 preferred_element_type=jnp.float32)
    h2 = jnp.maximum(h2 + b2_ref[...], 0.0)
    # Layer 3: N=1 output -> VPU multiply + XLU lane reduction (keeps the MXU
    # free, avoids a lane-sparse (128,1) matmul).  b3 is a scalar in SMEM.
    logits = jnp.sum(h2 * w3_ref[...], axis=-1, keepdims=True) + b3_ref[0, 0]
    o_ref[...] = jax.nn.sigmoid(logits).astype(o_ref.dtype)


def _round_up(x, m):
    return ((x + m - 1) // m) * m


def _choose_tiling(B, max_tile=2048, min_tiles=2):
    """Pick (tb, b_pad, n_tiles): balanced 8-row-aligned tiles.

    - >= min_tiles grid steps whenever B allows (so v7x megacore sharding of
      the "parallel" batch axis has work for both TensorCores),
    - tb capped near max_tile to amortize per-grid-step overhead,
    - padding limited to < 8 * n_tiles rows (no full-tile padding blow-up).
    """
    b8 = _round_up(max(B, 8), 8)
    n_tiles = max(pl.cdiv(B, max_tile), min(min_tiles, b8 // 8))
    tb = _round_up(pl.cdiv(B, n_tiles), 8)
    b_pad = tb * n_tiles
    return tb, b_pad, n_tiles


def simple_nn_forward(x_nchw, params, *, max_tile=2048):
    w1, b1, w2, b2, w3, b3 = params
    B = x_nchw.shape[0]

    # nn.Flatten on NCHW -> (B, C*H*W), row-major.  x stays f32 (the bf16 cast
    # for the MXU happens inside the kernel, tile by tile).
    x = x_nchw.reshape(B, IN_DIM).astype(jnp.float32)

    tb, b_pad, n_tiles = _choose_tiling(B, max_tile=max_tile)
    if b_pad != B:
        x = jnp.pad(x, ((0, b_pad - B), (0, 0)))

    w1b = w1.astype(jnp.bfloat16)
    w2b = w2.astype(jnp.bfloat16)
    b1f = b1.reshape(1, H1).astype(jnp.float32)
    b2f = b2.reshape(1, H2).astype(jnp.float32)
    w3_row = w3.reshape(1, H2).astype(jnp.float32)   # (1, 128) row for VPU layer 3
    b3_s = b3.reshape(1, 1).astype(jnp.float32)      # scalar -> SMEM

    resident = lambda i: (0, 0)   # weights/biases: same block every grid step

    weight_bytes = (w1b.size * 2 + w2b.size * 2 +
                    b1f.size * 4 + b2f.size * 4 + w3_row.size * 4 + 4)
    cost = pl.CostEstimate(
        flops=2 * b_pad * (IN_DIM * H1 + H1 * H2 + H2 * OUT),
        transcendentals=b_pad,
        bytes_accessed=b_pad * IN_DIM * 4 + weight_bytes + b_pad * OUT * 4,
    )

    out = pl.pallas_call(
        mlp_kernel,
        out_shape=jax.ShapeDtypeStruct((b_pad, OUT), jnp.float32),
        grid=(n_tiles,),
        in_specs=[
            pl.BlockSpec((tb, IN_DIM), lambda i: (i, 0)),        # x tiles (pipelined)
            pl.BlockSpec((IN_DIM, H1), resident),                # w1 (resident)
            pl.BlockSpec((1, H1), resident),                     # b1
            pl.BlockSpec((H1, H2), resident),                    # w2
            pl.BlockSpec((1, H2), resident),                     # b2
            pl.BlockSpec((1, H2), resident),                     # w3 row
            pl.BlockSpec(memory_space=pltpu.MemorySpace.SMEM),   # b3 scalar
        ],
        out_specs=pl.BlockSpec((tb, OUT), lambda i: (i, 0)),
        compiler_params=pltpu.CompilerParams(
            dimension_semantics=("parallel",),
            vmem_limit_bytes=48 * 1024 * 1024,   # safe on v7x (64 MiB/TC), ample elsewhere
        ),
        cost_estimate=cost,
    )(x, w1b, b1f, w2b, b2f, w3_row, b3_s)

    return out[:B]


def reference_forward(x_nchw, params):
    # Pure-JAX reference using the same bf16-operand / f32-accumulate recipe.
    w1, b1, w2, b2, w3, b3 = params
    x = x_nchw.reshape(x_nchw.shape[0], IN_DIM).astype(jnp.bfloat16)
    h1 = jnp.maximum(
        jnp.dot(x, w1.astype(jnp.bfloat16), preferred_element_type=jnp.float32)
        + b1.reshape(1, H1), 0.0)
    h2 = jnp.maximum(
        jnp.dot(h1.astype(jnp.bfloat16), w2.astype(jnp.bfloat16),
                preferred_element_type=jnp.float32) + b2.reshape(1, H2), 0.0)
    logits = jnp.dot(h2, w3.reshape(H2, OUT),
                     preferred_element_type=jnp.float32) + b3.reshape(1, OUT)
    return jax.nn.sigmoid(logits)


def init_params(key):
    k1, k2, k3 = jax.random.split(key, 3)
    # Deterministic synthetic init (scaled normal); biases zero-initialized.
    # TODO(synk): bf16 weight/x operands (f32 accumulate) drift ~1e-2 relative
    # vs a pure-f32 PyTorch forward near the sigmoid midpoint.
    w1 = jax.random.normal(k1, (IN_DIM, H1), jnp.float32) * (1.0 / jnp.sqrt(IN_DIM))
    b1 = jnp.zeros((1, H1), jnp.float32)
    w2 = jax.random.normal(k2, (H1, H2), jnp.float32) * (1.0 / jnp.sqrt(H1))
    b2 = jnp.zeros((1, H2), jnp.float32)
    w3 = jax.random.normal(k3, (H2, OUT), jnp.float32) * (1.0 / jnp.sqrt(H2))
    b3 = jnp.zeros((1, OUT), jnp.float32)
    return (w1, b1, w2, b2, w3, b3)


if __name__ == "__main__":
    key = jax.random.PRNGKey(0)
    kx, kp = jax.random.split(key)
    B = 2
    x = jax.random.normal(kx, (B, 3, IMG_SIZE, IMG_SIZE), jnp.float32)
    params = init_params(kp)

    out = jax.block_until_ready(simple_nn_forward(x, params))

    # Sanity: shape (B, 1), finite, in [0, 1], and matches the pure-JAX reference.
    assert out.shape == (B, OUT)
    assert bool(jnp.all(jnp.isfinite(out)))
    assert bool(jnp.all((out >= 0.0) & (out <= 1.0)))
    ref = jax.block_until_ready(reference_forward(x, params))
    assert bool(jnp.allclose(out, ref, atol=2e-3, rtol=2e-3)), (out, ref)

    # Exercise a multi-tile (megacore-shardable) batch as well.
    B2 = 520
    x2 = jax.random.normal(kx, (B2, 3, IMG_SIZE, IMG_SIZE), jnp.float32)
    out2 = jax.block_until_ready(simple_nn_forward(x2, params))
    ref2 = jax.block_until_ready(reference_forward(x2, params))
    assert out2.shape == (B2, OUT)
    assert bool(jnp.allclose(out2, ref2, atol=2e-3, rtol=2e-3))

    print("KERNEL_OK")
</pallas_src>

<mosaic_0001>
module attributes {stable_mosaic.version = 11 : i64} {
  func.func @mlp_kernel(%arg0: i32, %arg1: memref<8x768xf32, #tpu.memory_space<vmem>>, %arg2: memref<768x512xbf16, #tpu.memory_space<vmem>>, %arg3: memref<1x512xf32, #tpu.memory_space<vmem>>, %arg4: memref<512x128xbf16, #tpu.memory_space<vmem>>, %arg5: memref<1x128xf32, #tpu.memory_space<vmem>>, %arg6: memref<1x128xf32, #tpu.memory_space<vmem>>, %arg7: memref<1x1xf32, #tpu.memory_space<smem>>, %arg8: memref<8x1xf32, #tpu.memory_space<vmem>>) attributes {dimension_semantics = [#tpu.dimension_semantics<parallel>], iteration_bounds = array<i64: 1>, scalar_prefetch = 0 : i64, scratch_operands = 0 : i64, tpu.core_type = #tpu.core_type<tc>, window_params = [{transform_indices = @transform_0, window_bounds = array<i64: 8, 768>}, {pipeline_mode = #tpu.pipeline_mode<synchronous>, transform_indices = @transform_1, window_bounds = array<i64: 768, 512>}, {pipeline_mode = #tpu.pipeline_mode<synchronous>, transform_indices = @transform_2, window_bounds = array<i64: 1, 512>}, {pipeline_mode = #tpu.pipeline_mode<synchronous>, transform_indices = @transform_3, window_bounds = array<i64: 512, 128>}, {pipeline_mode = #tpu.pipeline_mode<synchronous>, transform_indices = @transform_4, window_bounds = array<i64: 1, 128>}, {pipeline_mode = #tpu.pipeline_mode<synchronous>, transform_indices = @transform_5, window_bounds = array<i64: 1, 128>}, {transform_indices = @transform_6, window_bounds = array<i64: 1, 1>}, {transform_indices = @transform_7, window_bounds = array<i64: 8, 1>}]} {
    %c0 = arith.constant 0 : index
    %c0_0 = arith.constant 0 : index
    %0 = vector.load %arg1[%c0, %c0_0] : memref<8x768xf32, #tpu.memory_space<vmem>>, vector<8x768xf32>
    %1 = arith.truncf %0 : vector<8x768xf32> to vector<8x768xbf16>
    %c0_1 = arith.constant 0 : index
    %c0_2 = arith.constant 0 : index
    %2 = vector.load %arg2[%c0_1, %c0_2] : memref<768x512xbf16, #tpu.memory_space<vmem>>, vector<768x512xbf16>
    %cst = arith.constant dense<0.000000e+00> : vector<8x512xf32>
    %3 = tpu.matmul %1, %2, %cst {dimension_numbers = #tpu.dot_dimension_numbers<[1], [0], [0], [1], [0, 0, 1, 1], [], []>} : vector<8x768xbf16>, vector<768x512xbf16>, vector<8x512xf32> -> vector<8x512xf32>
    %c0_3 = arith.constant 0 : index
    %c0_4 = arith.constant 0 : index
    %4 = vector.load %arg3[%c0_3, %c0_4] : memref<1x512xf32, #tpu.memory_space<vmem>>, vector<1x512xf32>
    %5 = vector.broadcast %4 : vector<1x512xf32> to vector<8x512xf32>
    %6 = arith.addf %3, %5 : vector<8x512xf32>
    %cst_5 = arith.constant 0.000000e+00 : f32
    %7 = vector.broadcast %cst_5 : f32 to vector<8x512xf32>
    %8 = arith.maximumf %6, %7 : vector<8x512xf32>
    %9 = arith.truncf %8 : vector<8x512xf32> to vector<8x512xbf16>
    %c0_6 = arith.constant 0 : index
    %c0_7 = arith.constant 0 : index
    %10 = vector.load %arg4[%c0_6, %c0_7] : memref<512x128xbf16, #tpu.memory_space<vmem>>, vector<512x128xbf16>
    %cst_8 = arith.constant dense<0.000000e+00> : vector<8x128xf32>
    %11 = tpu.matmul %9, %10, %cst_8 {dimension_numbers = #tpu.dot_dimension_numbers<[1], [0], [0], [1], [0, 0, 1, 1], [], []>} : vector<8x512xbf16>, vector<512x128xbf16>, vector<8x128xf32> -> vector<8x128xf32>
    %c0_9 = arith.constant 0 : index
    %c0_10 = arith.constant 0 : index
    %12 = vector.load %arg5[%c0_9, %c0_10] : memref<1x128xf32, #tpu.memory_space<vmem>>, vector<1x128xf32>
    %13 = vector.broadcast %12 : vector<1x128xf32> to vector<8x128xf32>
    %14 = arith.addf %11, %13 : vector<8x128xf32>
    %cst_11 = arith.constant 0.000000e+00 : f32
    %15 = vector.broadcast %cst_11 : f32 to vector<8x128xf32>
    %16 = arith.maximumf %14, %15 : vector<8x128xf32>
    %c0_12 = arith.constant 0 : index
    %c0_13 = arith.constant 0 : index
    %17 = vector.load %arg6[%c0_12, %c0_13] : memref<1x128xf32, #tpu.memory_space<vmem>>, vector<1x128xf32>
    %18 = vector.broadcast %17 : vector<1x128xf32> to vector<8x128xf32>
    %19 = arith.mulf %16, %18 : vector<8x128xf32>
    %cst_14 = arith.constant dense<0.000000e+00> : vector<8xf32>
    %20 = vector.multi_reduction <add>, %19, %cst_14 [1] : vector<8x128xf32> to vector<8xf32>
    %21 = vector.shape_cast %20 : vector<8xf32> to vector<8x1xf32>
    %c0_15 = arith.constant 0 : index
    %c0_16 = arith.constant 0 : index
    %22 = memref.load %arg7[%c0_15, %c0_16] : memref<1x1xf32, #tpu.memory_space<smem>>
    %23 = vector.broadcast %22 : f32 to vector<8x1xf32>
    %24 = arith.addf %21, %23 : vector<8x1xf32>
    %25 = arith.negf %24 : vector<8x1xf32>
    %26 = math.exp %25 : vector<8x1xf32>
    %cst_17 = arith.constant 1.000000e+00 : f32
    %27 = vector.broadcast %cst_17 : f32 to vector<8x1xf32>
    %28 = arith.addf %27, %26 : vector<8x1xf32>
    %29 = arith.divf %27, %28 : vector<8x1xf32>
    %c0_18 = arith.constant 0 : index
    %c0_19 = arith.constant 0 : index
    %30 = vector.load %arg8[%c0_18, %c0_19] : memref<8x1xf32, #tpu.memory_space<vmem>>, vector<8x1xf32>
    tpu.vector_store %arg8[%c0_18, %c0_19], %29 {strides = array<i32>} : memref<8x1xf32, #tpu.memory_space<vmem>>, vector<8x1xf32>,
    return
  }
  func.func @transform_0(%arg0: i32) -> (i32, i32) {
    %c0_i32 = arith.constant 0 : i32
    %c0_i32_0 = arith.constant 0 : i32
    return %arg0, %c0_i32 : i32, i32
  }
  func.func @transform_1(%arg0: i32) -> (i32, i32) {
    %c0_i32 = arith.constant 0 : i32
    %c0_i32_0 = arith.constant 0 : i32
    %c0_i32_1 = arith.constant 0 : i32
    return %c0_i32, %c0_i32_0 : i32, i32
  }
  func.func @transform_2(%arg0: i32) -> (i32, i32) {
    %c0_i32 = arith.constant 0 : i32
    %c0_i32_0 = arith.constant 0 : i32
    %c0_i32_1 = arith.constant 0 : i32
    return %c0_i32, %c0_i32_0 : i32, i32
  }
  func.func @transform_3(%arg0: i32) -> (i32, i32) {
    %c0_i32 = arith.constant 0 : i32
    %c0_i32_0 = arith.constant 0 : i32
    %c0_i32_1 = arith.constant 0 : i32
    return %c0_i32, %c0_i32_0 : i32, i32
  }
  func.func @transform_4(%arg0: i32) -> (i32, i32) {
    %c0_i32 = arith.constant 0 : i32
    %c0_i32_0 = arith.constant 0 : i32
    %c0_i32_1 = arith.constant 0 : i32
    return %c0_i32, %c0_i32_0 : i32, i32
  }
  func.func @transform_5(%arg0: i32) -> (i32, i32) {
    %c0_i32 = arith.constant 0 : i32
    %c0_i32_0 = arith.constant 0 : i32
    %c0_i32_1 = arith.constant 0 : i32
    return %c0_i32, %c0_i32_0 : i32, i32
  }
  func.func @transform_6(%arg0: i32) -> (i32, i32) {
    %c0_i32 = arith.constant 0 : i32
    %c0_i32_0 = arith.constant 0 : i32
    %c0_i32_1 = arith.constant 0 : i32
    return %c0_i32, %c0_i32_0 : i32, i32
  }
  func.func @transform_7(%arg0: i32) -> (i32, i32) {
    %c0_i32 = arith.constant 0 : i32
    %c0_i32_0 = arith.constant 0 : i32
    return %arg0, %c0_i32 : i32, i32
  }
}

</mosaic_0001>

<llo_original>
// kernel: tpu_custom_call.1
$region0: #{tpu_custom_call.1}
  #allocation0 [shape = 'u32[]', space=smem, size = 0x4, offset = 0x4, fixed_abs, tag = 'smem constant byte address 0x4 - core index']
  #allocation1 [shape = 'u32[72,128]{1,0:T(1,128)}', space=vmem, size = 0x9000, scoped, tag = 'internal scratch']
  #allocation2 [shape = 'f32[1,1]{1,0:T(1,128)S(6)}', space=smem, size = 0x200, scoped, tag = 'scoped memory for tpu_custom_call.1']
  %s0 = inlined_call_operand.hbm [shape: f32[8,768], index: 0, kind: input, shape index: {}]
  %s1 = inlined_call_operand.hbm [shape: bf16[768,512], index: 1, kind: input, shape index: {}]
  %s2 = inlined_call_operand.hbm [shape: f32[1,512], index: 2, kind: input, shape index: {}]
  %s3 = inlined_call_operand.hbm [shape: bf16[512,128], index: 3, kind: input, shape index: {}]
  %s4 = inlined_call_operand.vmem [shape: f32[1,128], index: 4, kind: input, shape index: {}]
  %s5 = inlined_call_operand.vmem [shape: f32[1,128], index: 5, kind: input, shape index: {}]
  %s6 = inlined_call_operand.<no memory space> [shape: f32[1,1], index: 6, kind: input, shape index: {}]
  %s7 = inlined_call_operand.vmem [shape: f32[8,1], index: 7, kind: output, shape index: {}]
  %s8 = sld [smem:[#allocation0]]
  $region54: #{tpu_custom_call.1} parent=0
    _
  %s10 = ssub.s32 1, %s8
  %s11 = scalar_select 0, %s10, %s8
  %12 = sst [smem:[#allocation2]] %s6
  $region1: #{tpu_custom_call.1} parent=0
    #allocation3 [shape = 'u8[24576]{0}', space=vmem, size = 0x6000, scoped, tag = 'input window, operand 0, single buffered']
    #allocation4 [shape = 's32[1]{0}', space=sflag, size = 0x4, scoped, tag = 'scoped memory for tpu_custom_call.1']
    #allocation5 [shape = 'u8[786432]{0}', space=vmem, size = 0xc0000, scoped, tag = 'input window, operand 1, single buffered']
    #allocation6 [shape = 's32[1]{0}', space=sflag, size = 0x4, scoped, tag = 'scoped memory for tpu_custom_call.1']
    #allocation7 [shape = 'u8[2048]{0}', space=vmem, size = 0x800, scoped, tag = 'input window, operand 2, single buffered']
    #allocation8 [shape = 'u8[131072]{0}', space=vmem, size = 0x20000, scoped, tag = 'input window, operand 3, single buffered']
    #allocation9 [shape = 's32[1]{0}', space=sflag, size = 0x4, scoped, tag = 'scoped memory for tpu_custom_call.1']
    %13 = vsyncpa [#allocation4], 0
    %14 = vsyncpa [#allocation6], 0
    %15 = vsyncpa [#allocation9], 0
    // Predicated region
    $region2: #{tpu_custom_call.1} parent=1 // pred_check
      _
    $region3: #{tpu_custom_call.1} parent=1 // pred_check_branch
      %17 = sbr.rel (0) target = $region5
    $region4: #{tpu_custom_call.1} parent=1 // pred_region
      %19 = vsyncadd [#allocation4], 0
      %s21 = sshll.u32 %s0, 4
      %s22 = int_to_ptr.hbm [resolvable:$true] %s21
      %s23 = sshll.u32 [#allocation3], 4
      %s24 = int_to_ptr.vmem [resolvable:$true] %s23
      %26 = dma.hbm_to_vmem [thread:$0]  %s22, 768, %s24, [#allocation4]
    $region5: #{tpu_custom_call.1} parent=1 // pred_fallthru
      _
    // Predicated region
    $region6: #{tpu_custom_call.1} parent=1 // pred_check
      _
    $region7: #{tpu_custom_call.1} parent=1 // pred_check_branch
      %28 = sbr.rel (0) target = $region9
    $region8: #{tpu_custom_call.1} parent=1 // pred_region
      %30 = vsyncadd [#allocation6], 0
      %s31 = sshll.u32 %s1, 4
      %s32 = int_to_ptr.hbm [resolvable:$true] %s31
      %s33 = sshll.u32 [#allocation5], 4
      %s34 = int_to_ptr.vmem [resolvable:$true] %s33
      %39 = dma.hbm_to_vmem [thread:$0]  %s32, 24576, %s34, [#allocation6], 256, 256, 16
    $region9: #{tpu_custom_call.1} parent=1 // pred_fallthru
      _
    // Predicated region
    $region10: #{tpu_custom_call.1} parent=1 // pred_check
      _
    $region11: #{tpu_custom_call.1} parent=1 // pred_check_branch
      %41 = sbr.rel (0) target = $region13
    $region12: #{tpu_custom_call.1} parent=1 // pred_region
      %43 = vsyncadd [#allocation6], 0
      %s45 = sshll.u32 %s2, 4
      %s46 = int_to_ptr.hbm [resolvable:$true] %s45
      %s47 = sshll.u32 [#allocation7], 4
      %s48 = int_to_ptr.vmem [resolvable:$true] %s47
      %50 = dma.hbm_to_vmem [thread:$0]  %s46, 64, %s48, [#allocation6]
    $region13: #{tpu_custom_call.1} parent=1 // pred_fallthru
      _
    // Predicated region
    $region14: #{tpu_custom_call.1} parent=1 // pred_check
      _
    $region15: #{tpu_custom_call.1} parent=1 // pred_check_branch
      %52 = sbr.rel (0) target = $region17
    $region16: #{tpu_custom_call.1} parent=1 // pred_region
      %54 = vsyncadd [#allocation9], 0
      %s55 = sshll.u32 %s3, 4
      %s56 = int_to_ptr.hbm [resolvable:$true] %s55
      %s57 = sshll.u32 [#allocation8], 4
      %s58 = int_to_ptr.vmem [resolvable:$true] %s57
      %63 = dma.hbm_to_vmem [thread:$0]  %s56, 4096, %s58, [#allocation9], 64, 64, 4
    $region17: #{tpu_custom_call.1} parent=1 // pred_fallthru
      _
    // Predicated region
    $region18: #{tpu_custom_call.1} parent=1 // pred_check
      _
    $region19: #{tpu_custom_call.1} parent=1 // pred_check_branch
      %65 = sbr.rel (0) target = $region21
    $region20: #{tpu_custom_call.1} parent=1 // pred_region
      _
    $region21: #{tpu_custom_call.1} parent=1 // pred_fallthru
      _
    // Predicated region
    $region22: #{tpu_custom_call.1} parent=1 // pred_check
      _
    $region23: #{tpu_custom_call.1} parent=1 // pred_check_branch
      %67 = sbr.rel (0) target = $region25
    $region24: #{tpu_custom_call.1} parent=1 // pred_region
      _
    $region25: #{tpu_custom_call.1} parent=1 // pred_fallthru
      _
    // Predicated region
    $region26: #{tpu_custom_call.1} parent=1 // pred_check
      _
    $region27: #{tpu_custom_call.1} parent=1 // pred_check_branch
      %69 = sbr.rel (0) target = $region29
    $region28: #{tpu_custom_call.1} parent=1 // pred_region
      _
    $region29: #{tpu_custom_call.1} parent=1 // pred_fallthru
      _
    // Predicated region
    $region30: #{tpu_custom_call.1} parent=1 // pred_check
      _
    $region31: #{tpu_custom_call.1} parent=1 // pred_check_branch
      %71 = sbr.rel (0) target = $region33
    $region32: #{tpu_custom_call.1} parent=1 // pred_region
      %73 = dma.done [#allocation4], 768
    $region33: #{tpu_custom_call.1} parent=1 // pred_fallthru
      _
    // Predicated region
    $region34: #{tpu_custom_call.1} parent=1 // pred_check
      _
    $region35: #{tpu_custom_call.1} parent=1 // pred_check_branch
      %75 = sbr.rel (0) target = $region37
    $region36: #{tpu_custom_call.1} parent=1 // pred_region
      %77 = dma.done [#allocation6], 24576
    $region37: #{tpu_custom_call.1} parent=1 // pred_fallthru
      _
    // Predicated region
    $region38: #{tpu_custom_call.1} parent=1 // pred_check
      _
    $region39: #{tpu_custom_call.1} parent=1 // pred_check_branch
      %79 = sbr.rel (0) target = $region41
    $region40: #{tpu_custom_call.1} parent=1 // pred_region
      %81 = dma.done [#allocation6], 64
    $region41: #{tpu_custom_call.1} parent=1 // pred_fallthru
      _
    // Predicated region
    $region42: #{tpu_custom_call.1} parent=1 // pred_check
      _
    $region43: #{tpu_custom_call.1} parent=1 // pred_check_branch
      %83 = sbr.rel (0) target = $region45
    $region44: #{tpu_custom_call.1} parent=1 // pred_region
      %85 = dma.done [#allocation9], 4096
    $region45: #{tpu_custom_call.1} parent=1 // pred_fallthru
      _
    %v86 = vld [vmem:[#allocation3] sm:$0xff]
    %v87 = vld [vmem:[#allocation3 + $0x8] sm:$0xff]
    %v88 = vld [vmem:[#allocation3 + $0x10] sm:$0xff]
    %v89 = vld [vmem:[#allocation3 + $0x18] sm:$0xff]
    %v90 = vld [vmem:[#allocation3 + $0x20] sm:$0xff]
    %v91 = vld [vmem:[#allocation3 + $0x28] sm:$0xff]
    %v92 = vpack.c.bf16 %v86, %v86
    %v93 = vpack.c.bf16 %v87, %v87
    %v94 = vpack.c.bf16 %v88, %v88
    %v95 = vpack.c.bf16 %v89, %v89
    %v96 = vpack.c.bf16 %v90, %v90
    %v97 = vpack.c.bf16 %v91, %v91
    %v98 = vld [vmem:[#allocation5] sm:$0xff]
    %v99 = vld [vmem:[#allocation5 + $0x8] sm:$0xff]
    %v100 = vld [vmem:[#allocation5 + $0x10] sm:$0xff]
    %v101 = vld [vmem:[#allocation5 + $0x18] sm:$0xff]
    %v102 = vld [vmem:[#allocation5 + $0x20] sm:$0xff]
    %v103 = vld [vmem:[#allocation5 + $0x28] sm:$0xff]
    %v104 = vld [vmem:[#allocation5 + $0x30] sm:$0xff]
    %v105 = vld [vmem:[#allocation5 + $0x38] sm:$0xff]
    %v106 = vld [vmem:[#allocation5 + $0x40] sm:$0xff]
    %v107 = vld [vmem:[#allocation5 + $0x48] sm:$0xff]
    %v108 = vld [vmem:[#allocation5 + $0x50] sm:$0xff]
    %v109 = vld [vmem:[#allocation5 + $0x58] sm:$0xff]
    %v110 = vld [vmem:[#allocation5 + $0x60] sm:$0xff]
    %v111 = vld [vmem:[#allocation5 + $0x68] sm:$0xff]
    %v112 = vld [vmem:[#allocation5 + $0x70] sm:$0xff]
    %v113 = vld [vmem:[#allocation5 + $0x78] sm:$0xff]
    %v114 = vld [vmem:[#allocation5 + $0x80] sm:$0xff]
    %v115 = vld [vmem:[#allocation5 + $0x88] sm:$0xff]
    %v116 = vld [vmem:[#allocation5 + $0x90] sm:$0xff]
    %v117 = vld [vmem:[#allocation5 + $0x98] sm:$0xff]
    %v118 = vld [vmem:[#allocation5 + $0xa0] sm:$0xff]
    %v119 = vld [vmem:[#allocation5 + $0xa8] sm:$0xff]
    %v120 = vld [vmem:[#allocation5 + $0xb0] sm:$0xff]
    %v121 = vld [vmem:[#allocation5 + $0xb8] sm:$0xff]
    %v122 = vld [vmem:[#allocation5 + $0xc0] sm:$0xff]
    %v123 = vld [vmem:[#allocation5 + $0xc8] sm:$0xff]
    %v124 = vld [vmem:[#allocation5 + $0xd0] sm:$0xff]
    %v125 = vld [vmem:[#allocation5 + $0xd8] sm:$0xff]
    %v126 = vld [vmem:[#allocation5 + $0xe0] sm:$0xff]
    %v127 = vld [vmem:[#allocation5 + $0xe8] sm:$0xff]
    %v128 = vld [vmem:[#allocation5 + $0xf0] sm:$0xff]
    %v129 = vld [vmem:[#allocation5 + $0xf8] sm:$0xff]
    %v130 = vld [vmem:[#allocation5 + $0x100] sm:$0xff]
    %v131 = vld [vmem:[#allocation5 + $0x108] sm:$0xff]
    %v132 = vld [vmem:[#allocation5 + $0x110] sm:$0xff]
    %v133 = vld [vmem:[#allocation5 + $0x118] sm:$0xff]
    %v134 = vld [vmem:[#allocation5 + $0x120] sm:$0xff]
    %v135 = vld [vmem:[#allocation5 + $0x128] sm:$0xff]
    %v136 = vld [vmem:[#allocation5 + $0x130] sm:$0xff]
    %v137 = vld [vmem:[#allocation5 + $0x138] sm:$0xff]
    %v138 = vld [vmem:[#allocation5 + $0x140] sm:$0xff]
    %v139 = vld [vmem:[#allocation5 + $0x148] sm:$0xff]
    %v140 = vld [vmem:[#allocation5 + $0x150] sm:$0xff]
    %v141 = vld [vmem:[#allocation5 + $0x158] sm:$0xff]
    %v142 = vld [vmem:[#allocation5 + $0x160] sm:$0xff]
    %v143 = vld [vmem:[#allocation5 + $0x168] sm:$0xff]
    %v144 = vld [vmem:[#allocation5 + $0x170] sm:$0xff]
    %v145 = vld [vmem:[#allocation5 + $0x178] sm:$0xff]
    %v146 = vld [vmem:[#allocation5 + $0x180] sm:$0xff]
    %v147 = vld [vmem:[#allocation5 + $0x188] sm:$0xff]
    %v148 = vld [vmem:[#allocation5 + $0x190] sm:$0xff]
    %v149 = vld [vmem:[#allocation5 + $0x198] sm:$0xff]
    %v150 = vld [vmem:[#allocation5 + $0x1a0] sm:$0xff]
    %v151 = vld [vmem:[#allocation5 + $0x1a8] sm:$0xff]
    %v152 = vld [vmem:[#allocation5 + $0x1b0] sm:$0xff]
    %v153 = vld [vmem:[#allocation5 + $0x1b8] sm:$0xff]
    %v154 = vld [vmem:[#allocation5 + $0x1c0] sm:$0xff]
    %v155 = vld [vmem:[#allocation5 + $0x1c8] sm:$0xff]
    %v156 = vld [vmem:[#allocation5 + $0x1d0] sm:$0xff]
    %v157 = vld [vmem:[#allocation5 + $0x1d8] sm:$0xff]
    %v158 = vld [vmem:[#allocation5 + $0x1e0] sm:$0xff]
    %v159 = vld [vmem:[#allocation5 + $0x1e8] sm:$0xff]
    %v160 = vld [vmem:[#allocation5 + $0x1f0] sm:$0xff]
    %v161 = vld [vmem:[#allocation5 + $0x1f8] sm:$0xff]
    %v162 = vld [vmem:[#allocation5 + $0x200] sm:$0xff]
    %v163 = vld [vmem:[#allocation5 + $0x208] sm:$0xff]
    %v164 = vld [vmem:[#allocation5 + $0x210] sm:$0xff]
    %v165 = vld [vmem:[#allocation5 + $0x218] sm:$0xff]
    %v166 = vld [vmem:[#allocation5 + $0x220] sm:$0xff]
    %v167 = vld [vmem:[#allocation5 + $0x228] sm:$0xff]
    %v168 = vld [vmem:[#allocation5 + $0x230] sm:$0xff]
    %v169 = vld [vmem:[#allocation5 + $0x238] sm:$0xff]
    %v170 = vld [vmem:[#allocation5 + $0x240] sm:$0xff]
    %v171 = vld [vmem:[#allocation5 + $0x248] sm:$0xff]
    %v172 = vld [vmem:[#allocation5 + $0x250] sm:$0xff]
    %v173 = vld [vmem:[#allocation5 + $0x258] sm:$0xff]
    %v174 = vld [vmem:[#allocation5 + $0x260] sm:$0xff]
    %v175 = vld [vmem:[#allocation5 + $0x268] sm:$0xff]
    %v176 = vld [vmem:[#allocation5 + $0x270] sm:$0xff]
    %v177 = vld [vmem:[#allocation5 + $0x278] sm:$0xff]
    %v178 = vld [vmem:[#allocation5 + $0x280] sm:$0xff]
    %v179 = vld [vmem:[#allocation5 + $0x288] sm:$0xff]
    %v180 = vld [vmem:[#allocation5 + $0x290] sm:$0xff]
    %v181 = vld [vmem:[#allocation5 + $0x298] sm:$0xff]
    %v182 = vld [vmem:[#allocation5 + $0x2a0] sm:$0xff]
    %v183 = vld [vmem:[#allocation5 + $0x2a8] sm:$0xff]
    %v184 = vld [vmem:[#allocation5 + $0x2b0] sm:$0xff]
    %v185 = vld [vmem:[#allocation5 + $0x2b8] sm:$0xff]
    %v186 = vld [vmem:[#allocation5 + $0x2c0] sm:$0xff]
    %v187 = vld [vmem:[#allocation5 + $0x2c8] sm:$0xff]
    %v188 = vld [vmem:[#allocation5 + $0x2d0] sm:$0xff]
    %v189 = vld [vmem:[#allocation5 + $0x2d8] sm:$0xff]
    %v190 = vld [vmem:[#allocation5 + $0x2e0] sm:$0xff]
    %v191 = vld [vmem:[#allocation5 + $0x2e8] sm:$0xff]
    %v192 = vld [vmem:[#allocation5 + $0x2f0] sm:$0xff]
    %v193 = vld [vmem:[#allocation5 + $0x2f8] sm:$0xff]
    %v194 = vld [vmem:[#allocation5 + $0x300] sm:$0xff]
    %v195 = vld [vmem:[#allocation5 + $0x308] sm:$0xff]
    %v196 = vld [vmem:[#allocation5 + $0x310] sm:$0xff]
    %v197 = vld [vmem:[#allocation5 + $0x318] sm:$0xff]
    %v198 = vld [vmem:[#allocation5 + $0x320] sm:$0xff]
    %v199 = vld [vmem:[#allocation5 + $0x328] sm:$0xff]
    %v200 = vld [vmem:[#allocation5 + $0x330] sm:$0xff]
    %v201 = vld [vmem:[#allocation5 + $0x338] sm:$0xff]
    %v202 = vld [vmem:[#allocation5 + $0x340] sm:$0xff]
    %v203 = vld [vmem:[#allocation5 + $0x348] sm:$0xff]
    %v204 = vld [vmem:[#allocation5 + $0x350] sm:$0xff]
    %v205 = vld [vmem:[#allocation5 + $0x358] sm:$0xff]
    %v206 = vld [vmem:[#allocation5 + $0x360] sm:$0xff]
    %v207 = vld [vmem:[#allocation5 + $0x368] sm:$0xff]
    %v208 = vld [vmem:[#allocation5 + $0x370] sm:$0xff]
    %v209 = vld [vmem:[#allocation5 + $0x378] sm:$0xff]
    %v210 = vld [vmem:[#allocation5 + $0x380] sm:$0xff]
    %v211 = vld [vmem:[#allocation5 + $0x388] sm:$0xff]
    %v212 = vld [vmem:[#allocation5 + $0x390] sm:$0xff]
    %v213 = vld [vmem:[#allocation5 + $0x398] sm:$0xff]
    %v214 = vld [vmem:[#allocation5 + $0x3a0] sm:$0xff]
    %v215 = vld [vmem:[#allocation5 + $0x3a8] sm:$0xff]
    %v216 = vld [vmem:[#allocation5 + $0x3b0] sm:$0xff]
    %v217 = vld [vmem:[#allocation5 + $0x3b8] sm:$0xff]
    %v218 = vld [vmem:[#allocation5 + $0x3c0] sm:$0xff]
    %v219 = vld [vmem:[#allocation5 + $0x3c8] sm:$0xff]
    %v220 = vld [vmem:[#allocation5 + $0x3d0] sm:$0xff]
    %v221 = vld [vmem:[#allocation5 + $0x3d8] sm:$0xff]
    %v222 = vld [vmem:[#allocation5 + $0x3e0] sm:$0xff]
    %v223 = vld [vmem:[#allocation5 + $0x3e8] sm:$0xff]
    %v224 = vld [vmem:[#allocation5 + $0x3f0] sm:$0xff]
    %v225 = vld [vmem:[#allocation5 + $0x3f8] sm:$0xff]
    %v226 = vld [vmem:[#allocation5 + $0x400] sm:$0xff]
    %v227 = vld [vmem:[#allocation5 + $0x408] sm:$0xff]
    %v228 = vld [vmem:[#allocation5 + $0x410] sm:$0xff]
    %v229 = vld [vmem:[#allocation5 + $0x418] sm:$0xff]
    %v230 = vld [vmem:[#allocation5 + $0x420] sm:$0xff]
    %v231 = vld [vmem:[#allocation5 + $0x428] sm:$0xff]
    %v232 = vld [vmem:[#allocation5 + $0x430] sm:$0xff]
    %v233 = vld [vmem:[#allocation5 + $0x438] sm:$0xff]
    %v234 = vld [vmem:[#allocation5 + $0x440] sm:$0xff]
    %v235 = vld [vmem:[#allocation5 + $0x448] sm:$0xff]
    %v236 = vld [vmem:[#allocation5 + $0x450] sm:$0xff]
    %v237 = vld [vmem:[#allocation5 + $0x458] sm:$0xff]
    %v238 = vld [vmem:[#allocation5 + $0x460] sm:$0xff]
    %v239 = vld [vmem:[#allocation5 + $0x468] sm:$0xff]
    %v240 = vld [vmem:[#allocation5 + $0x470] sm:$0xff]
    %v241 = vld [vmem:[#allocation5 + $0x478] sm:$0xff]
    %v242 = vld [vmem:[#allocation5 + $0x480] sm:$0xff]
    %v243 = vld [vmem:[#allocation5 + $0x488] sm:$0xff]
    %v244 = vld [vmem:[#allocation5 + $0x490] sm:$0xff]
    %v245 = vld [vmem:[#allocation5 + $0x498] sm:$0xff]
    %v246 = vld [vmem:[#allocation5 + $0x4a0] sm:$0xff]
    %v247 = vld [vmem:[#allocation5 + $0x4a8] sm:$0xff]
    %v248 = vld [vmem:[#allocation5 + $0x4b0] sm:$0xff]
    %v249 = vld [vmem:[#allocation5 + $0x4b8] sm:$0xff]
    %v250 = vld [vmem:[#allocation5 + $0x4c0] sm:$0xff]
    %v251 = vld [vmem:[#allocation5 + $0x4c8] sm:$0xff]
    %v252 = vld [vmem:[#allocation5 + $0x4d0] sm:$0xff]
    %v253 = vld [vmem:[#allocation5 + $0x4d8] sm:$0xff]
    %v254 = vld [vmem:[#allocation5 + $0x4e0] sm:$0xff]
    %v255 = vld [vmem:[#allocation5 + $0x4e8] sm:$0xff]
    %v256 = vld [vmem:[#allocation5 + $0x4f0] sm:$0xff]
    %v257 = vld [vmem:[#allocation5 + $0x4f8] sm:$0xff]
    %v258 = vld [vmem:[#allocation5 + $0x500] sm:$0xff]
    %v259 = vld [vmem:[#allocation5 + $0x508] sm:$0xff]
    %v260 = vld [vmem:[#allocation5 + $0x510] sm:$0xff]
    %v261 = vld [vmem:[#allocation5 + $0x518] sm:$0xff]
    %v262 = vld [vmem:[#allocation5 + $0x520] sm:$0xff]
    %v263 = vld [vmem:[#allocation5 + $0x528] sm:$0xff]
    %v264 = vld [vmem:[#allocation5 + $0x530] sm:$0xff]
    %v265 = vld [vmem:[#allocation5 + $0x538] sm:$0xff]
    %v266 = vld [vmem:[#allocation5 + $0x540] sm:$0xff]
    %v267 = vld [vmem:[#allocation5 + $0x548] sm:$0xff]
    %v268 = vld [vmem:[#allocation5 + $0x550] sm:$0xff]
    %v269 = vld [vmem:[#allocation5 + $0x558] sm:$0xff]
    %v270 = vld [vmem:[#allocation5 + $0x560] sm:$0xff]
    %v271 = vld [vmem:[#allocation5 + $0x568] sm:$0xff]
    %v272 = vld [vmem:[#allocation5 + $0x570] sm:$0xff]
    %v273 = vld [vmem:[#allocation5 + $0x578] sm:$0xff]
    %v274 = vld [vmem:[#allocation5 + $0x580] sm:$0xff]
    %v275 = vld [vmem:[#allocation5 + $0x588] sm:$0xff]
    %v276 = vld [vmem:[#allocation5 + $0x590] sm:$0xff]
    %v277 = vld [vmem:[#allocation5 + $0x598] sm:$0xff]
    %v278 = vld [vmem:[#allocation5 + $0x5a0] sm:$0xff]
    %v279 = vld [vmem:[#allocation5 + $0x5a8] sm:$0xff]
    %v280 = vld [vmem:[#allocation5 + $0x5b0] sm:$0xff]
    %v281 = vld [vmem:[#allocation5 + $0x5b8] sm:$0xff]
    %v282 = vld [vmem:[#allocation5 + $0x5c0] sm:$0xff]
    %v283 = vld [vmem:[#allocation5 + $0x5c8] sm:$0xff]
    %v284 = vld [vmem:[#allocation5 + $0x5d0] sm:$0xff]
    %v285 = vld [vmem:[#allocation5 + $0x5d8] sm:$0xff]
    %v286 = vld [vmem:[#allocation5 + $0x5e0] sm:$0xff]
    %v287 = vld [vmem:[#allocation5 + $0x5e8] sm:$0xff]
    %v288 = vld [vmem:[#allocation5 + $0x5f0] sm:$0xff]
    %v289 = vld [vmem:[#allocation5 + $0x5f8] sm:$0xff]
    %v290 = vld [vmem:[#allocation7] sm:$0xf]
    %v292 = vperm.slane %v290, 0
    %v293 = vperm.slane %v290, 1
    %v294 = vperm.slane %v290, 2
    %v295 = vperm.slane %v290, 3
    %v492 = vunpack.c.l.b16 %v98
    %v493 = vunpack.c.h.b16 %v98
    %v494 = vunpack.c.l.b16 %v99
    %v495 = vunpack.c.h.b16 %v99
    %v496 = vunpack.c.l.b16 %v100
    %v497 = vunpack.c.h.b16 %v100
    %v498 = vunpack.c.l.b16 %v101
    %v499 = vunpack.c.h.b16 %v101
    %v500 = vunpack.c.l.b16 %v102
    %v501 = vunpack.c.h.b16 %v102
    %v502 = vunpack.c.l.b16 %v103
    %v503 = vunpack.c.h.b16 %v103
    %v504 = vunpack.c.l.b16 %v104
    %v505 = vunpack.c.h.b16 %v104
    %v506 = vunpack.c.l.b16 %v105
    %v507 = vunpack.c.h.b16 %v105
    %v508 = vunpack.c.l.b16 %v106
    %v509 = vunpack.c.h.b16 %v106
    %v510 = vunpack.c.l.b16 %v107
    %v511 = vunpack.c.h.b16 %v107
    %v512 = vunpack.c.l.b16 %v108
    %v513 = vunpack.c.h.b16 %v108
    %v514 = vunpack.c.l.b16 %v109
    %v515 = vunpack.c.h.b16 %v109
    %v516 = vunpack.c.l.b16 %v110
    %v517 = vunpack.c.h.b16 %v110
    %v518 = vunpack.c.l.b16 %v111
    %v519 = vunpack.c.h.b16 %v111
    %v520 = vunpack.c.l.b16 %v112
    %v521 = vunpack.c.h.b16 %v112
    %v522 = vunpack.c.l.b16 %v113
    %v523 = vunpack.c.h.b16 %v113
    %v524 = vunpack.c.l.b16 %v114
    %v525 = vunpack.c.h.b16 %v114
    %v526 = vunpack.c.l.b16 %v115
    %v527 = vunpack.c.h.b16 %v115
    %v528 = vunpack.c.l.b16 %v116
    %v529 = vunpack.c.h.b16 %v116
    %v530 = vunpack.c.l.b16 %v117
    %v531 = vunpack.c.h.b16 %v117
    %v532 = vunpack.c.l.b16 %v118
    %v533 = vunpack.c.h.b16 %v118
    %v534 = vunpack.c.l.b16 %v119
    %v535 = vunpack.c.h.b16 %v119
    %v536 = vunpack.c.l.b16 %v120
    %v537 = vunpack.c.h.b16 %v120
    %v538 = vunpack.c.l.b16 %v121
    %v539 = vunpack.c.h.b16 %v121
    %v540 = vunpack.c.l.b16 %v122
    %v541 = vunpack.c.h.b16 %v122
    %v542 = vunpack.c.l.b16 %v123
    %v543 = vunpack.c.h.b16 %v123
    %v544 = vunpack.c.l.b16 %v124
    %v545 = vunpack.c.h.b16 %v124
    %v546 = vunpack.c.l.b16 %v125
    %v547 = vunpack.c.h.b16 %v125
    %v548 = vunpack.c.l.b16 %v126
    %v549 = vunpack.c.h.b16 %v126
    %v550 = vunpack.c.l.b16 %v127
    %v551 = vunpack.c.h.b16 %v127
    %v552 = vunpack.c.l.b16 %v128
    %v553 = vunpack.c.h.b16 %v128
    %v554 = vunpack.c.l.b16 %v129
    %v555 = vunpack.c.h.b16 %v129
    %v556 = vunpack.c.l.b16 %v130
    %v557 = vunpack.c.h.b16 %v130
    %v558 = vunpack.c.l.b16 %v131
    %v559 = vunpack.c.h.b16 %v131
    %v560 = vunpack.c.l.b16 %v132
    %v561 = vunpack.c.h.b16 %v132
    %v562 = vunpack.c.l.b16 %v133
    %v563 = vunpack.c.h.b16 %v133
    %v564 = vunpack.c.l.b16 %v134
    %v565 = vunpack.c.h.b16 %v134
    %v566 = vunpack.c.l.b16 %v135
    %v567 = vunpack.c.h.b16 %v135
    %v568 = vunpack.c.l.b16 %v136
    %v569 = vunpack.c.h.b16 %v136
    %v570 = vunpack.c.l.b16 %v137
    %v571 = vunpack.c.h.b16 %v137
    %v572 = vunpack.c.l.b16 %v138
    %v573 = vunpack.c.h.b16 %v138
    %v574 = vunpack.c.l.b16 %v139
    %v575 = vunpack.c.h.b16 %v139
    %v576 = vunpack.c.l.b16 %v140
    %v577 = vunpack.c.h.b16 %v140
    %v578 = vunpack.c.l.b16 %v141
    %v579 = vunpack.c.h.b16 %v141
    %v580 = vunpack.c.l.b16 %v142
    %v581 = vunpack.c.h.b16 %v142
    %v582 = vunpack.c.l.b16 %v143
    %v583 = vunpack.c.h.b16 %v143
    %v584 = vunpack.c.l.b16 %v144
    %v585 = vunpack.c.h.b16 %v144
    %v586 = vunpack.c.l.b16 %v145
    %v587 = vunpack.c.h.b16 %v145
    %v588 = vunpack.c.l.b16 %v146
    %v589 = vunpack.c.h.b16 %v146
    %v590 = vunpack.c.l.b16 %v147
    %v591 = vunpack.c.h.b16 %v147
    %v592 = vunpack.c.l.b16 %v148
    %v593 = vunpack.c.h.b16 %v148
    %v594 = vunpack.c.l.b16 %v149
    %v595 = vunpack.c.h.b16 %v149
    %v596 = vunpack.c.l.b16 %v150
    %v597 = vunpack.c.h.b16 %v150
    %v598 = vunpack.c.l.b16 %v151
    %v599 = vunpack.c.h.b16 %v151
    %v600 = vunpack.c.l.b16 %v152
    %v601 = vunpack.c.h.b16 %v152
    %v602 = vunpack.c.l.b16 %v153
    %v603 = vunpack.c.h.b16 %v153
    %v604 = vunpack.c.l.b16 %v154
    %v605 = vunpack.c.h.b16 %v154
    %v606 = vunpack.c.l.b16 %v155
    %v607 = vunpack.c.h.b16 %v155
    %v608 = vunpack.c.l.b16 %v156
    %v609 = vunpack.c.h.b16 %v156
    %v610 = vunpack.c.l.b16 %v157
    %v611 = vunpack.c.h.b16 %v157
    %v612 = vunpack.c.l.b16 %v158
    %v613 = vunpack.c.h.b16 %v158
    %v614 = vunpack.c.l.b16 %v159
    %v615 = vunpack.c.h.b16 %v159
    %v616 = vunpack.c.l.b16 %v160
    %v617 = vunpack.c.h.b16 %v160
    %v618 = vunpack.c.l.b16 %v161
    %v619 = vunpack.c.h.b16 %v161
    %v620 = vunpack.c.l.b16 %v162
    %v621 = vunpack.c.h.b16 %v162
    %v622 = vunpack.c.l.b16 %v163
    %v623 = vunpack.c.h.b16 %v163
    %v624 = vunpack.c.l.b16 %v164
    %v625 = vunpack.c.h.b16 %v164
    %v626 = vunpack.c.l.b16 %v165
    %v627 = vunpack.c.h.b16 %v165
    %v628 = vunpack.c.l.b16 %v166
    %v629 = vunpack.c.h.b16 %v166
    %v630 = vunpack.c.l.b16 %v167
    %v631 = vunpack.c.h.b16 %v167
    %v632 = vunpack.c.l.b16 %v168
    %v633 = vunpack.c.h.b16 %v168
    %v634 = vunpack.c.l.b16 %v169
    %v635 = vunpack.c.h.b16 %v169
    %v636 = vunpack.c.l.b16 %v170
    %v637 = vunpack.c.h.b16 %v170
    %v638 = vunpack.c.l.b16 %v171
    %v639 = vunpack.c.h.b16 %v171
    %v640 = vunpack.c.l.b16 %v172
    %v641 = vunpack.c.h.b16 %v172
    %v642 = vunpack.c.l.b16 %v173
    %v643 = vunpack.c.h.b16 %v173
    %v644 = vunpack.c.l.b16 %v174
    %v645 = vunpack.c.h.b16 %v174
    %v646 = vunpack.c.l.b16 %v175
    %v647 = vunpack.c.h.b16 %v175
    %v648 = vunpack.c.l.b16 %v176
    %v649 = vunpack.c.h.b16 %v176
    %v650 = vunpack.c.l.b16 %v177
    %v651 = vunpack.c.h.b16 %v177
    %v652 = vunpack.c.l.b16 %v178
    %v653 = vunpack.c.h.b16 %v178
    %v654 = vunpack.c.l.b16 %v179
    %v655 = vunpack.c.h.b16 %v179
    %v656 = vunpack.c.l.b16 %v180
    %v657 = vunpack.c.h.b16 %v180
    %v658 = vunpack.c.l.b16 %v181
    %v659 = vunpack.c.h.b16 %v181
    %v660 = vunpack.c.l.b16 %v182
    %v661 = vunpack.c.h.b16 %v182
    %v662 = vunpack.c.l.b16 %v183
    %v663 = vunpack.c.h.b16 %v183
    %v664 = vunpack.c.l.b16 %v184
    %v665 = vunpack.c.h.b16 %v184
    %v666 = vunpack.c.l.b16 %v185
    %v667 = vunpack.c.h.b16 %v185
    %v668 = vunpack.c.l.b16 %v186
    %v669 = vunpack.c.h.b16 %v186
    %v670 = vunpack.c.l.b16 %v187
    %v671 = vunpack.c.h.b16 %v187
    %v672 = vunpack.c.l.b16 %v188
    %v673 = vunpack.c.h.b16 %v188
    %v674 = vunpack.c.l.b16 %v189
    %v675 = vunpack.c.h.b16 %v189
    %v676 = vunpack.c.l.b16 %v190
    %v677 = vunpack.c.h.b16 %v190
    %v678 = vunpack.c.l.b16 %v191
    %v679 = vunpack.c.h.b16 %v191
    %v680 = vunpack.c.l.b16 %v192
    %v681 = vunpack.c.h.b16 %v192
    %v682 = vunpack.c.l.b16 %v193
    %v683 = vunpack.c.h.b16 %v193
    %v684 = vunpack.c.l.b16 %v194
    %v685 = vunpack.c.h.b16 %v194
    %v686 = vunpack.c.l.b16 %v195
    %v687 = vunpack.c.h.b16 %v195
    %v688 = vunpack.c.l.b16 %v196
    %v689 = vunpack.c.h.b16 %v196
    %v690 = vunpack.c.l.b16 %v197
    %v691 = vunpack.c.h.b16 %v197
    %v692 = vunpack.c.l.b16 %v198
    %v693 = vunpack.c.h.b16 %v198
    %v694 = vunpack.c.l.b16 %v199
    %v695 = vunpack.c.h.b16 %v199
    %v696 = vunpack.c.l.b16 %v200
    %v697 = vunpack.c.h.b16 %v200
    %v698 = vunpack.c.l.b16 %v201
    %v699 = vunpack.c.h.b16 %v201
    %v700 = vunpack.c.l.b16 %v202
    %v701 = vunpack.c.h.b16 %v202
    %v702 = vunpack.c.l.b16 %v203
    %v703 = vunpack.c.h.b16 %v203
    %v704 = vunpack.c.l.b16 %v204
    %v705 = vunpack.c.h.b16 %v204
    %v706 = vunpack.c.l.b16 %v205
    %v707 = vunpack.c.h.b16 %v205
    %v708 = vunpack.c.l.b16 %v206
    %v709 = vunpack.c.h.b16 %v206
    %v710 = vunpack.c.l.b16 %v207
    %v711 = vunpack.c.h.b16 %v207
    %v712 = vunpack.c.l.b16 %v208
    %v713 = vunpack.c.h.b16 %v208
    %v714 = vunpack.c.l.b16 %v209
    %v715 = vunpack.c.h.b16 %v209
    %v716 = vunpack.c.l.b16 %v210
    %v717 = vunpack.c.h.b16 %v210
    %v718 = vunpack.c.l.b16 %v211
    %v719 = vunpack.c.h.b16 %v211
    %v720 = vunpack.c.l.b16 %v212
    %v721 = vunpack.c.h.b16 %v212
    %v722 = vunpack.c.l.b16 %v213
    %v723 = vunpack.c.h.b16 %v213
    %v724 = vunpack.c.l.b16 %v214
    %v725 = vunpack.c.h.b16 %v214
    %v726 = vunpack.c.l.b16 %v215
    %v727 = vunpack.c.h.b16 %v215
    %v728 = vunpack.c.l.b16 %v216
    %v729 = vunpack.c.h.b16 %v216
    %v730 = vunpack.c.l.b16 %v217
    %v731 = vunpack.c.h.b16 %v217
    %v732 = vunpack.c.l.b16 %v218
    %v733 = vunpack.c.h.b16 %v218
    %v734 = vunpack.c.l.b16 %v219
    %v735 = vunpack.c.h.b16 %v219
    %v736 = vunpack.c.l.b16 %v220
    %v737 = vunpack.c.h.b16 %v220
    %v738 = vunpack.c.l.b16 %v221
    %v739 = vunpack.c.h.b16 %v221
    %v740 = vunpack.c.l.b16 %v222
    %v741 = vunpack.c.h.b16 %v222
    %v742 = vunpack.c.l.b16 %v223
    %v743 = vunpack.c.h.b16 %v223
    %v744 = vunpack.c.l.b16 %v224
    %v745 = vunpack.c.h.b16 %v224
    %v746 = vunpack.c.l.b16 %v225
    %v747 = vunpack.c.h.b16 %v225
    %v748 = vunpack.c.l.b16 %v226
    %v749 = vunpack.c.h.b16 %v226
    %v750 = vunpack.c.l.b16 %v227
    %v751 = vunpack.c.h.b16 %v227
    %v752 = vunpack.c.l.b16 %v228
    %v753 = vunpack.c.h.b16 %v228
    %v754 = vunpack.c.l.b16 %v229
    %v755 = vunpack.c.h.b16 %v229
    %v756 = vunpack.c.l.b16 %v230
    %v757 = vunpack.c.h.b16 %v230
    %v758 = vunpack.c.l.b16 %v231
    %v759 = vunpack.c.h.b16 %v231
    %v760 = vunpack.c.l.b16 %v232
    %v761 = vunpack.c.h.b16 %v232
    %v762 = vunpack.c.l.b16 %v233
    %v763 = vunpack.c.h.b16 %v233
    %v764 = vunpack.c.l.b16 %v234
    %v765 = vunpack.c.h.b16 %v234
    %v766 = vunpack.c.l.b16 %v235
    %v767 = vunpack.c.h.b16 %v235
    %v768 = vunpack.c.l.b16 %v236
    %v769 = vunpack.c.h.b16 %v236
    %v770 = vunpack.c.l.b16 %v237
    %v771 = vunpack.c.h.b16 %v237
    %v772 = vunpack.c.l.b16 %v238
    %v773 = vunpack.c.h.b16 %v238
    %v774 = vunpack.c.l.b16 %v239
    %v775 = vunpack.c.h.b16 %v239
    %v776 = vunpack.c.l.b16 %v240
    %v777 = vunpack.c.h.b16 %v240
    %v778 = vunpack.c.l.b16 %v241
    %v779 = vunpack.c.h.b16 %v241
    %v780 = vunpack.c.l.b16 %v242
    %v781 = vunpack.c.h.b16 %v242
    %v782 = vunpack.c.l.b16 %v243
    %v783 = vunpack.c.h.b16 %v243
    %v784 = vunpack.c.l.b16 %v244
    %v785 = vunpack.c.h.b16 %v244
    %v786 = vunpack.c.l.b16 %v245
    %v787 = vunpack.c.h.b16 %v245
    %v788 = vunpack.c.l.b16 %v246
    %v789 = vunpack.c.h.b16 %v246
    %v790 = vunpack.c.l.b16 %v247
    %v791 = vunpack.c.h.b16 %v247
    %v792 = vunpack.c.l.b16 %v248
    %v793 = vunpack.c.h.b16 %v248
    %v794 = vunpack.c.l.b16 %v249
    %v795 = vunpack.c.h.b16 %v249
    %v796 = vunpack.c.l.b16 %v250
    %v797 = vunpack.c.h.b16 %v250
    %v798 = vunpack.c.l.b16 %v251
    %v799 = vunpack.c.h.b16 %v251
    %v800 = vunpack.c.l.b16 %v252
    %v801 = vunpack.c.h.b16 %v252
    %v802 = vunpack.c.l.b16 %v253
    %v803 = vunpack.c.h.b16 %v253
    %v804 = vunpack.c.l.b16 %v254
    %v805 = vunpack.c.h.b16 %v254
    %v806 = vunpack.c.l.b16 %v255
    %v807 = vunpack.c.h.b16 %v255
    %v808 = vunpack.c.l.b16 %v256
    %v809 = vunpack.c.h.b16 %v256
    %v810 = vunpack.c.l.b16 %v257
    %v811 = vunpack.c.h.b16 %v257
    %v812 = vunpack.c.l.b16 %v258
    %v813 = vunpack.c.h.b16 %v258
    %v814 = vunpack.c.l.b16 %v259
    %v815 = vunpack.c.h.b16 %v259
    %v816 = vunpack.c.l.b16 %v260
    %v817 = vunpack.c.h.b16 %v260
    %v818 = vunpack.c.l.b16 %v261
    %v819 = vunpack.c.h.b16 %v261
    %v820 = vunpack.c.l.b16 %v262
    %v821 = vunpack.c.h.b16 %v262
    %v822 = vunpack.c.l.b16 %v263
    %v823 = vunpack.c.h.b16 %v263
    %v824 = vunpack.c.l.b16 %v264
    %v825 = vunpack.c.h.b16 %v264
    %v826 = vunpack.c.l.b16 %v265
    %v827 = vunpack.c.h.b16 %v265
    %v828 = vunpack.c.l.b16 %v266
    %v829 = vunpack.c.h.b16 %v266
    %v830 = vunpack.c.l.b16 %v267
    %v831 = vunpack.c.h.b16 %v267
    %v832 = vunpack.c.l.b16 %v268
    %v833 = vunpack.c.h.b16 %v268
    %v834 = vunpack.c.l.b16 %v269
    %v835 = vunpack.c.h.b16 %v269
    %v836 = vunpack.c.l.b16 %v270
    %v837 = vunpack.c.h.b16 %v270
    %v838 = vunpack.c.l.b16 %v271
    %v839 = vunpack.c.h.b16 %v271
    %v840 = vunpack.c.l.b16 %v272
    %v841 = vunpack.c.h.b16 %v272
    %v842 = vunpack.c.l.b16 %v273
    %v843 = vunpack.c.h.b16 %v273
    %v844 = vunpack.c.l.b16 %v274
    %v845 = vunpack.c.h.b16 %v274
    %v846 = vunpack.c.l.b16 %v275
    %v847 = vunpack.c.h.b16 %v275
    %v848 = vunpack.c.l.b16 %v276
    %v849 = vunpack.c.h.b16 %v276
    %v850 = vunpack.c.l.b16 %v277
    %v851 = vunpack.c.h.b16 %v277
    %v852 = vunpack.c.l.b16 %v278
    %v853 = vunpack.c.h.b16 %v278
    %v854 = vunpack.c.l.b16 %v279
    %v855 = vunpack.c.h.b16 %v279
    %v856 = vunpack.c.l.b16 %v280
    %v857 = vunpack.c.h.b16 %v280
    %v858 = vunpack.c.l.b16 %v281
    %v859 = vunpack.c.h.b16 %v281
    %v860 = vunpack.c.l.b16 %v282
    %v861 = vunpack.c.h.b16 %v282
    %v862 = vunpack.c.l.b16 %v283
    %v863 = vunpack.c.h.b16 %v283
    %v864 = vunpack.c.l.b16 %v284
    %v865 = vunpack.c.h.b16 %v284
    %v866 = vunpack.c.l.b16 %v285
    %v867 = vunpack.c.h.b16 %v285
    %v868 = vunpack.c.l.b16 %v286
    %v869 = vunpack.c.h.b16 %v286
    %v870 = vunpack.c.l.b16 %v287
    %v871 = vunpack.c.h.b16 %v287
    %v872 = vunpack.c.l.b16 %v288
    %v873 = vunpack.c.h.b16 %v288
    %v874 = vunpack.c.l.b16 %v289
    %v875 = vunpack.c.h.b16 %v289
    %v876 = vpack.c.b16 %v496, %v492
    %v877 = vpack.c.b16 %v497, %v493
    %v878 = vpack.c.b16 %v498, %v494
    %v879 = vpack.c.b16 %v499, %v495
    %v880 = vpack.c.b16 %v504, %v500
    %v881 = vpack.c.b16 %v505, %v501
    %v882 = vpack.c.b16 %v506, %v502
    %v883 = vpack.c.b16 %v507, %v503
    %v884 = vpack.c.b16 %v512, %v508
    %v885 = vpack.c.b16 %v513, %v509
    %v886 = vpack.c.b16 %v514, %v510
    %v887 = vpack.c.b16 %v515, %v511
    %v888 = vpack.c.b16 %v520, %v516
    %v889 = vpack.c.b16 %v521, %v517
    %v890 = vpack.c.b16 %v522, %v518
    %v891 = vpack.c.b16 %v523, %v519
    %v892 = vpack.c.b16 %v528, %v524
    %v893 = vpack.c.b16 %v529, %v525
    %v894 = vpack.c.b16 %v530, %v526
    %v895 = vpack.c.b16 %v531, %v527
    %v896 = vpack.c.b16 %v536, %v532
    %v897 = vpack.c.b16 %v537, %v533
    %v898 = vpack.c.b16 %v538, %v534
    %v899 = vpack.c.b16 %v539, %v535
    %v900 = vpack.c.b16 %v544, %v540
    %v901 = vpack.c.b16 %v545, %v541
    %v902 = vpack.c.b16 %v546, %v542
    %v903 = vpack.c.b16 %v547, %v543
    %v904 = vpack.c.b16 %v552, %v548
    %v905 = vpack.c.b16 %v553, %v549
    %v906 = vpack.c.b16 %v554, %v550
    %v907 = vpack.c.b16 %v555, %v551
    %v908 = vpack.c.b16 %v560, %v556
    %v909 = vpack.c.b16 %v561, %v557
    %v910 = vpack.c.b16 %v562, %v558
    %v911 = vpack.c.b16 %v563, %v559
    %v912 = vpack.c.b16 %v568, %v564
    %v913 = vpack.c.b16 %v569, %v565
    %v914 = vpack.c.b16 %v570, %v566
    %v915 = vpack.c.b16 %v571, %v567
    %v916 = vpack.c.b16 %v576, %v572
    %v917 = vpack.c.b16 %v577, %v573
    %v918 = vpack.c.b16 %v578, %v574
    %v919 = vpack.c.b16 %v579, %v575
    %v920 = vpack.c.b16 %v584, %v580
    %v921 = vpack.c.b16 %v585, %v581
    %v922 = vpack.c.b16 %v586, %v582
    %v923 = vpack.c.b16 %v587, %v583
    %v924 = vpack.c.b16 %v592, %v588
    %v925 = vpack.c.b16 %v593, %v589
    %v926 = vpack.c.b16 %v594, %v590
    %v927 = vpack.c.b16 %v595, %v591
    %v928 = vpack.c.b16 %v600, %v596
    %v929 = vpack.c.b16 %v601, %v597
    %v930 = vpack.c.b16 %v602, %v598
    %v931 = vpack.c.b16 %v603, %v599
    %v932 = vpack.c.b16 %v608, %v604
    %v933 = vpack.c.b16 %v609, %v605
    %v934 = vpack.c.b16 %v610, %v606
    %v935 = vpack.c.b16 %v611, %v607
    %v936 = vpack.c.b16 %v616, %v612
    %v937 = vpack.c.b16 %v617, %v613
    %v938 = vpack.c.b16 %v618, %v614
    %v939 = vpack.c.b16 %v619, %v615
    %v940 = vpack.c.b16 %v624, %v620
    %v941 = vpack.c.b16 %v625, %v621
    %v942 = vpack.c.b16 %v626, %v622
    %v943 = vpack.c.b16 %v627, %v623
    %v944 = vpack.c.b16 %v632, %v628
    %v945 = vpack.c.b16 %v633, %v629
    %v946 = vpack.c.b16 %v634, %v630
    %v947 = vpack.c.b16 %v635, %v631
    %v948 = vpack.c.b16 %v640, %v636
    %v949 = vpack.c.b16 %v641, %v637
    %v950 = vpack.c.b16 %v642, %v638
    %v951 = vpack.c.b16 %v643, %v639
    %v952 = vpack.c.b16 %v648, %v644
    %v953 = vpack.c.b16 %v649, %v645
    %v954 = vpack.c.b16 %v650, %v646
    %v955 = vpack.c.b16 %v651, %v647
    %v956 = vpack.c.b16 %v656, %v652
    %v957 = vpack.c.b16 %v657, %v653
    %v958 = vpack.c.b16 %v658, %v654
    %v959 = vpack.c.b16 %v659, %v655
    %v960 = vpack.c.b16 %v664, %v660
    %v961 = vpack.c.b16 %v665, %v661
    %v962 = vpack.c.b16 %v666, %v662
    %v963 = vpack.c.b16 %v667, %v663
    %v964 = vpack.c.b16 %v672, %v668
    %v965 = vpack.c.b16 %v673, %v669
    %v966 = vpack.c.b16 %v674, %v670
    %v967 = vpack.c.b16 %v675, %v671
    %v968 = vpack.c.b16 %v680, %v676
    %v969 = vpack.c.b16 %v681, %v677
    %v970 = vpack.c.b16 %v682, %v678
    %v971 = vpack.c.b16 %v683, %v679
    %v972 = vpack.c.b16 %v688, %v684
    %v973 = vpack.c.b16 %v689, %v685
    %v974 = vpack.c.b16 %v690, %v686
    %v975 = vpack.c.b16 %v691, %v687
    %v976 = vpack.c.b16 %v696, %v692
    %v977 = vpack.c.b16 %v697, %v693
    %v978 = vpack.c.b16 %v698, %v694
    %v979 = vpack.c.b16 %v699, %v695
    %v980 = vpack.c.b16 %v704, %v700
    %v981 = vpack.c.b16 %v705, %v701
    %v982 = vpack.c.b16 %v706, %v702
    %v983 = vpack.c.b16 %v707, %v703
    %v984 = vpack.c.b16 %v712, %v708
    %v985 = vpack.c.b16 %v713, %v709
    %v986 = vpack.c.b16 %v714, %v710
    %v987 = vpack.c.b16 %v715, %v711
    %v988 = vpack.c.b16 %v720, %v716
    %v989 = vpack.c.b16 %v721, %v717
    %v990 = vpack.c.b16 %v722, %v718
    %v991 = vpack.c.b16 %v723, %v719
    %v992 = vpack.c.b16 %v728, %v724
    %v993 = vpack.c.b16 %v729, %v725
    %v994 = vpack.c.b16 %v730, %v726
    %v995 = vpack.c.b16 %v731, %v727
    %v996 = vpack.c.b16 %v736, %v732
    %v997 = vpack.c.b16 %v737, %v733
    %v998 = vpack.c.b16 %v738, %v734
    %v999 = vpack.c.b16 %v739, %v735
    %v1000 = vpack.c.b16 %v744, %v740
    %v1001 = vpack.c.b16 %v745, %v741
    %v1002 = vpack.c.b16 %v746, %v742
    %v1003 = vpack.c.b16 %v747, %v743
    %v1004 = vpack.c.b16 %v752, %v748
    %v1005 = vpack.c.b16 %v753, %v749
    %v1006 = vpack.c.b16 %v754, %v750
    %v1007 = vpack.c.b16 %v755, %v751
    %v1008 = vpack.c.b16 %v760, %v756
    %v1009 = vpack.c.b16 %v761, %v757
    %v1010 = vpack.c.b16 %v762, %v758
    %v1011 = vpack.c.b16 %v763, %v759
    %v1012 = vpack.c.b16 %v768, %v764
    %v1013 = vpack.c.b16 %v769, %v765
    %v1014 = vpack.c.b16 %v770, %v766
    %v1015 = vpack.c.b16 %v771, %v767
    %v1016 = vpack.c.b16 %v776, %v772
    %v1017 = vpack.c.b16 %v777, %v773
    %v1018 = vpack.c.b16 %v778, %v774
    %v1019 = vpack.c.b16 %v779, %v775
    %v1020 = vpack.c.b16 %v784, %v780
    %v1021 = vpack.c.b16 %v785, %v781
    %v1022 = vpack.c.b16 %v786, %v782
    %v1023 = vpack.c.b16 %v787, %v783
    %v1024 = vpack.c.b16 %v792, %v788
    %v1025 = vpack.c.b16 %v793, %v789
    %v1026 = vpack.c.b16 %v794, %v790
    %v1027 = vpack.c.b16 %v795, %v791
    %v1028 = vpack.c.b16 %v800, %v796
    %v1029 = vpack.c.b16 %v801, %v797
    %v1030 = vpack.c.b16 %v802, %v798
    %v1031 = vpack.c.b16 %v803, %v799
    %v1032 = vpack.c.b16 %v808, %v804
    %v1033 = vpack.c.b16 %v809, %v805
    %v1034 = vpack.c.b16 %v810, %v806
    %v1035 = vpack.c.b16 %v811, %v807
    %v1036 = vpack.c.b16 %v816, %v812
    %v1037 = vpack.c.b16 %v817, %v813
    %v1038 = vpack.c.b16 %v818, %v814
    %v1039 = vpack.c.b16 %v819, %v815
    %v1040 = vpack.c.b16 %v824, %v820
    %v1041 = vpack.c.b16 %v825, %v821
    %v1042 = vpack.c.b16 %v826, %v822
    %v1043 = vpack.c.b16 %v827, %v823
    %v1044 = vpack.c.b16 %v832, %v828
    %v1045 = vpack.c.b16 %v833, %v829
    %v1046 = vpack.c.b16 %v834, %v830
    %v1047 = vpack.c.b16 %v835, %v831
    %v1048 = vpack.c.b16 %v840, %v836
    %v1049 = vpack.c.b16 %v841, %v837
    %v1050 = vpack.c.b16 %v842, %v838
    %v1051 = vpack.c.b16 %v843, %v839
    %v1052 = vpack.c.b16 %v848, %v844
    %v1053 = vpack.c.b16 %v849, %v845
    %v1054 = vpack.c.b16 %v850, %v846
    %v1055 = vpack.c.b16 %v851, %v847
    %v1056 = vpack.c.b16 %v856, %v852
    %v1057 = vpack.c.b16 %v857, %v853
    %v1058 = vpack.c.b16 %v858, %v854
    %v1059 = vpack.c.b16 %v859, %v855
    %v1060 = vpack.c.b16 %v864, %v860
    %v1061 = vpack.c.b16 %v865, %v861
    %v1062 = vpack.c.b16 %v866, %v862
    %v1063 = vpack.c.b16 %v867, %v863
    %v1064 = vpack.c.b16 %v872, %v868
    %v1065 = vpack.c.b16 %v873, %v869
    %v1066 = vpack.c.b16 %v874, %v870
    %v1067 = vpack.c.b16 %v875, %v871
    %1260 = vmatpush.bf16.msra.mxu0 %v904
    %1261 = vmatpush.bf16.msra.mxu0 %v900
    %1262 = vmatpush.bf16.msra.mxu0 %v896
    %1263 = vmatpush.bf16.msra.mxu0 %v892
    %1264 = vmatpush.bf16.msra.mxu0 %v888
    %1265 = vmatpush.bf16.msra.mxu0 %v884
    %1266 = vmatpush.bf16.msra.mxu0 %v880
    %1267 = vmatpush.bf16.msra.mxu0 %v876
    %1268 = vmatmul.bf16.gmra.mxu0 %v92
    %v1269 = vpop.f32.mrf.mxu0
    %v1270 = vadd.f32 %v292, %v1269
    %v1271 = vpop.f32.mrf.mxu0
    %1272 = vdwg.mxu0
    %1273 = vmatpush.bf16.msra.mxu0 %v936
    %1274 = vmatpush.bf16.msra.mxu0 %v932
    %1275 = vmatpush.bf16.msra.mxu0 %v928
    %1276 = vmatpush.bf16.msra.mxu0 %v924
    %1277 = vmatpush.bf16.msra.mxu0 %v920
    %1278 = vmatpush.bf16.msra.mxu0 %v916
    %1279 = vmatpush.bf16.msra.mxu0 %v912
    %1280 = vmatpush.bf16.msra.mxu0 %v908
    %1281 = vmatmul.bf16.gmra.mxu0 %v93
    %v1282 = vpop.f32.mrf.mxu0
    %v1283 = vadd.f32 %v1270, %v1282
    %v1284 = vpop.f32.mrf.mxu0
    %1285 = vdwg.mxu0
    %1286 = vmatpush.bf16.msra.mxu0 %v968
    %1287 = vmatpush.bf16.msra.mxu0 %v964
    %1288 = vmatpush.bf16.msra.mxu0 %v960
    %1289 = vmatpush.bf16.msra.mxu0 %v956
    %1290 = vmatpush.bf16.msra.mxu0 %v952
    %1291 = vmatpush.bf16.msra.mxu0 %v948
    %1292 = vmatpush.bf16.msra.mxu0 %v944
    %1293 = vmatpush.bf16.msra.mxu0 %v940
    %1294 = vmatmul.bf16.gmra.mxu0 %v94
    %v1295 = vpop.f32.mrf.mxu0
    %v1296 = vadd.f32 %v1283, %v1295
    %v1297 = vpop.f32.mrf.mxu0
    %1298 = vdwg.mxu0
    %1299 = vmatpush.bf16.msra.mxu0 %v1000
    %1300 = vmatpush.bf16.msra.mxu0 %v996
    %1301 = vmatpush.bf16.msra.mxu0 %v992
    %1302 = vmatpush.bf16.msra.mxu0 %v988
    %1303 = vmatpush.bf16.msra.mxu0 %v984
    %1304 = vmatpush.bf16.msra.mxu0 %v980
    %1305 = vmatpush.bf16.msra.mxu0 %v976
    %1306 = vmatpush.bf16.msra.mxu0 %v972
    %1307 = vmatmul.bf16.gmra.mxu0 %v95
    %v1308 = vpop.f32.mrf.mxu0
    %v1309 = vadd.f32 %v1296, %v1308
    %v1310 = vpop.f32.mrf.mxu0
    %1311 = vdwg.mxu0
    %1312 = vmatpush.bf16.msra.mxu0 %v1032
    %1313 = vmatpush.bf16.msra.mxu0 %v1028
    %1314 = vmatpush.bf16.msra.mxu0 %v1024
    %1315 = vmatpush.bf16.msra.mxu0 %v1020
    %1316 = vmatpush.bf16.msra.mxu0 %v1016
    %1317 = vmatpush.bf16.msra.mxu0 %v1012
    %1318 = vmatpush.bf16.msra.mxu0 %v1008
    %1319 = vmatpush.bf16.msra.mxu0 %v1004
    %1320 = vmatmul.bf16.gmra.mxu0 %v96
    %v1321 = vpop.f32.mrf.mxu0
    %v1322 = vadd.f32 %v1309, %v1321
    %v1323 = vpop.f32.mrf.mxu0
    %1324 = vdwg.mxu0
    %1325 = vmatpush.bf16.msra.mxu0 %v1064
    %1326 = vmatpush.bf16.msra.mxu0 %v1060
    %1327 = vmatpush.bf16.msra.mxu0 %v1056
    %1328 = vmatpush.bf16.msra.mxu0 %v1052
    %1329 = vmatpush.bf16.msra.mxu0 %v1048
    %1330 = vmatpush.bf16.msra.mxu0 %v1044
    %1331 = vmatpush.bf16.msra.mxu0 %v1040
    %1332 = vmatpush.bf16.msra.mxu0 %v1036
    %1333 = vmatmul.bf16.gmra.mxu0 %v97
    %v1334 = vpop.f32.mrf.mxu0
    %v1335 = vadd.f32 %v1322, %v1334
    %v1336 = vpop.f32.mrf.mxu0
    %1337 = vdwg.mxu0
    %1338 = vmatpush.bf16.msra.mxu0 %v905
    %1339 = vmatpush.bf16.msra.mxu0 %v901
    %1340 = vmatpush.bf16.msra.mxu0 %v897
    %1341 = vmatpush.bf16.msra.mxu0 %v893
    %1342 = vmatpush.bf16.msra.mxu0 %v889
    %1343 = vmatpush.bf16.msra.mxu0 %v885
    %1344 = vmatpush.bf16.msra.mxu0 %v881
    %1345 = vmatpush.bf16.msra.mxu0 %v877
    %1346 = vmatmul.bf16.gmra.mxu0 %v92
    %v1347 = vpop.f32.mrf.mxu0
    %v1348 = vadd.f32 %v293, %v1347
    %v1349 = vpop.f32.mrf.mxu0
    %1350 = vdwg.mxu0
    %1351 = vmatpush.bf16.msra.mxu0 %v937
    %1352 = vmatpush.bf16.msra.mxu0 %v933
    %1353 = vmatpush.bf16.msra.mxu0 %v929
    %1354 = vmatpush.bf16.msra.mxu0 %v925
    %1355 = vmatpush.bf16.msra.mxu0 %v921
    %1356 = vmatpush.bf16.msra.mxu0 %v917
    %1357 = vmatpush.bf16.msra.mxu0 %v913
    %1358 = vmatpush.bf16.msra.mxu0 %v909
    %1359 = vmatmul.bf16.gmra.mxu0 %v93
    %v1360 = vpop.f32.mrf.mxu0
    %v1361 = vadd.f32 %v1348, %v1360
    %v1362 = vpop.f32.mrf.mxu0
    %1363 = vdwg.mxu0
    %1364 = vmatpush.bf16.msra.mxu0 %v969
    %1365 = vmatpush.bf16.msra.mxu0 %v965
    %1366 = vmatpush.bf16.msra.mxu0 %v961
    %1367 = vmatpush.bf16.msra.mxu0 %v957
    %1368 = vmatpush.bf16.msra.mxu0 %v953
    %1369 = vmatpush.bf16.msra.mxu0 %v949
    %1370 = vmatpush.bf16.msra.mxu0 %v945
    %1371 = vmatpush.bf16.msra.mxu0 %v941
    %1372 = vmatmul.bf16.gmra.mxu0 %v94
    %v1373 = vpop.f32.mrf.mxu0
    %v1374 = vadd.f32 %v1361, %v1373
    %v1375 = vpop.f32.mrf.mxu0
    %1376 = vdwg.mxu0
    %1377 = vmatpush.bf16.msra.mxu0 %v1001
    %1378 = vmatpush.bf16.msra.mxu0 %v997
    %1379 = vmatpush.bf16.msra.mxu0 %v993
    %1380 = vmatpush.bf16.msra.mxu0 %v989
    %1381 = vmatpush.bf16.msra.mxu0 %v985
    %1382 = vmatpush.bf16.msra.mxu0 %v981
    %1383 = vmatpush.bf16.msra.mxu0 %v977
    %1384 = vmatpush.bf16.msra.mxu0 %v973
    %1385 = vmatmul.bf16.gmra.mxu0 %v95
    %v1386 = vpop.f32.mrf.mxu0
    %v1387 = vadd.f32 %v1374, %v1386
    %v1388 = vpop.f32.mrf.mxu0
    %1389 = vdwg.mxu0
    %1390 = vmatpush.bf16.msra.mxu0 %v1033
    %1391 = vmatpush.bf16.msra.mxu0 %v1029
    %1392 = vmatpush.bf16.msra.mxu0 %v1025
    %1393 = vmatpush.bf16.msra.mxu0 %v1021
    %1394 = vmatpush.bf16.msra.mxu0 %v1017
    %1395 = vmatpush.bf16.msra.mxu0 %v1013
    %1396 = vmatpush.bf16.msra.mxu0 %v1009
    %1397 = vmatpush.bf16.msra.mxu0 %v1005
    %1398 = vmatmul.bf16.gmra.mxu0 %v96
    %v1399 = vpop.f32.mrf.mxu0
    %v1400 = vadd.f32 %v1387, %v1399
    %v1401 = vpop.f32.mrf.mxu0
    %1402 = vdwg.mxu0
    %1403 = vmatpush.bf16.msra.mxu0 %v1065
    %1404 = vmatpush.bf16.msra.mxu0 %v1061
    %1405 = vmatpush.bf16.msra.mxu0 %v1057
    %1406 = vmatpush.bf16.msra.mxu0 %v1053
    %1407 = vmatpush.bf16.msra.mxu0 %v1049
    %1408 = vmatpush.bf16.msra.mxu0 %v1045
    %1409 = vmatpush.bf16.msra.mxu0 %v1041
    %1410 = vmatpush.bf16.msra.mxu0 %v1037
    %1411 = vmatmul.bf16.gmra.mxu0 %v97
    %v1412 = vpop.f32.mrf.mxu0
    %v1413 = vadd.f32 %v1400, %v1412
    %v1414 = vpop.f32.mrf.mxu0
    %1415 = vdwg.mxu0
    %1416 = vmatpush.bf16.msra.mxu0 %v906
    %1417 = vmatpush.bf16.msra.mxu0 %v902
    %1418 = vmatpush.bf16.msra.mxu0 %v898
    %1419 = vmatpush.bf16.msra.mxu0 %v894
    %1420 = vmatpush.bf16.msra.mxu0 %v890
    %1421 = vmatpush.bf16.msra.mxu0 %v886
    %1422 = vmatpush.bf16.msra.mxu0 %v882
    %1423 = vmatpush.bf16.msra.mxu0 %v878
    %1424 = vmatmul.bf16.gmra.mxu0 %v92
    %v1425 = vpop.f32.mrf.mxu0
    %v1426 = vadd.f32 %v294, %v1425
    %v1427 = vpop.f32.mrf.mxu0
    %1428 = vdwg.mxu0
    %1429 = vmatpush.bf16.msra.mxu0 %v938
    %1430 = vmatpush.bf16.msra.mxu0 %v934
    %1431 = vmatpush.bf16.msra.mxu0 %v930
    %1432 = vmatpush.bf16.msra.mxu0 %v926
    %1433 = vmatpush.bf16.msra.mxu0 %v922
    %1434 = vmatpush.bf16.msra.mxu0 %v918
    %1435 = vmatpush.bf16.msra.mxu0 %v914
    %1436 = vmatpush.bf16.msra.mxu0 %v910
    %1437 = vmatmul.bf16.gmra.mxu0 %v93
    %v1438 = vpop.f32.mrf.mxu0
    %v1439 = vadd.f32 %v1426, %v1438
    %v1440 = vpop.f32.mrf.mxu0
    %1441 = vdwg.mxu0
    %1442 = vmatpush.bf16.msra.mxu0 %v970
    %1443 = vmatpush.bf16.msra.mxu0 %v966
    %1444 = vmatpush.bf16.msra.mxu0 %v962
    %1445 = vmatpush.bf16.msra.mxu0 %v958
    %1446 = vmatpush.bf16.msra.mxu0 %v954
    %1447 = vmatpush.bf16.msra.mxu0 %v950
    %1448 = vmatpush.bf16.msra.mxu0 %v946
    %1449 = vmatpush.bf16.msra.mxu0 %v942
    %1450 = vmatmul.bf16.gmra.mxu0 %v94
    %v1451 = vpop.f32.mrf.mxu0
    %v1452 = vadd.f32 %v1439, %v1451
    %v1453 = vpop.f32.mrf.mxu0
    %1454 = vdwg.mxu0
    %1455 = vmatpush.bf16.msra.mxu0 %v1002
    %1456 = vmatpush.bf16.msra.mxu0 %v998
    %1457 = vmatpush.bf16.msra.mxu0 %v994
    %1458 = vmatpush.bf16.msra.mxu0 %v990
    %1459 = vmatpush.bf16.msra.mxu0 %v986
    %1460 = vmatpush.bf16.msra.mxu0 %v982
    %1461 = vmatpush.bf16.msra.mxu0 %v978
    %1462 = vmatpush.bf16.msra.mxu0 %v974
    %1463 = vmatmul.bf16.gmra.mxu0 %v95
    %v1464 = vpop.f32.mrf.mxu0
    %v1465 = vadd.f32 %v1452, %v1464
    %v1466 = vpop.f32.mrf.mxu0
    %1467 = vdwg.mxu0
    %1468 = vmatpush.bf16.msra.mxu0 %v1034
    %1469 = vmatpush.bf16.msra.mxu0 %v1030
    %1470 = vmatpush.bf16.msra.mxu0 %v1026
    %1471 = vmatpush.bf16.msra.mxu0 %v1022
    %1472 = vmatpush.bf16.msra.mxu0 %v1018
    %1473 = vmatpush.bf16.msra.mxu0 %v1014
    %1474 = vmatpush.bf16.msra.mxu0 %v1010
    %1475 = vmatpush.bf16.msra.mxu0 %v1006
    %1476 = vmatmul.bf16.gmra.mxu0 %v96
    %v1477 = vpop.f32.mrf.mxu0
    %v1478 = vadd.f32 %v1465, %v1477
    %v1479 = vpop.f32.mrf.mxu0
    %1480 = vdwg.mxu0
    %1481 = vmatpush.bf16.msra.mxu0 %v1066
    %1482 = vmatpush.bf16.msra.mxu0 %v1062
    %1483 = vmatpush.bf16.msra.mxu0 %v1058
    %1484 = vmatpush.bf16.msra.mxu0 %v1054
    %1485 = vmatpush.bf16.msra.mxu0 %v1050
    %1486 = vmatpush.bf16.msra.mxu0 %v1046
    %1487 = vmatpush.bf16.msra.mxu0 %v1042
    %1488 = vmatpush.bf16.msra.mxu0 %v1038
    %1489 = vmatmul.bf16.gmra.mxu0 %v97
    %v1490 = vpop.f32.mrf.mxu0
    %v1491 = vadd.f32 %v1478, %v1490
    %v1492 = vpop.f32.mrf.mxu0
    %1493 = vdwg.mxu0
    %1494 = vmatpush.bf16.msra.mxu0 %v907
    %1495 = vmatpush.bf16.msra.mxu0 %v903
    %1496 = vmatpush.bf16.msra.mxu0 %v899
    %1497 = vmatpush.bf16.msra.mxu0 %v895
    %1498 = vmatpush.bf16.msra.mxu0 %v891
    %1499 = vmatpush.bf16.msra.mxu0 %v887
    %1500 = vmatpush.bf16.msra.mxu0 %v883
    %1501 = vmatpush.bf16.msra.mxu0 %v879
    %1502 = vmatmul.bf16.gmra.mxu0 %v92
    %v1503 = vpop.f32.mrf.mxu0
    %v1504 = vadd.f32 %v295, %v1503
    %v1505 = vpop.f32.mrf.mxu0
    %1506 = vdwg.mxu0
    %1507 = vmatpush.bf16.msra.mxu0 %v939
    %1508 = vmatpush.bf16.msra.mxu0 %v935
    %1509 = vmatpush.bf16.msra.mxu0 %v931
    %1510 = vmatpush.bf16.msra.mxu0 %v927
    %1511 = vmatpush.bf16.msra.mxu0 %v923
    %1512 = vmatpush.bf16.msra.mxu0 %v919
    %1513 = vmatpush.bf16.msra.mxu0 %v915
    %1514 = vmatpush.bf16.msra.mxu0 %v911
    %1515 = vmatmul.bf16.gmra.mxu0 %v93
    %v1516 = vpop.f32.mrf.mxu0
    %v1517 = vadd.f32 %v1504, %v1516
    %v1518 = vpop.f32.mrf.mxu0
    %1519 = vdwg.mxu0
    %1520 = vmatpush.bf16.msra.mxu0 %v971
    %1521 = vmatpush.bf16.msra.mxu0 %v967
    %1522 = vmatpush.bf16.msra.mxu0 %v963
    %1523 = vmatpush.bf16.msra.mxu0 %v959
    %1524 = vmatpush.bf16.msra.mxu0 %v955
    %1525 = vmatpush.bf16.msra.mxu0 %v951
    %1526 = vmatpush.bf16.msra.mxu0 %v947
    %1527 = vmatpush.bf16.msra.mxu0 %v943
    %1528 = vmatmul.bf16.gmra.mxu0 %v94
    %v1529 = vpop.f32.mrf.mxu0
    %v1530 = vadd.f32 %v1517, %v1529
    %v1531 = vpop.f32.mrf.mxu0
    %1532 = vdwg.mxu0
    %1533 = vmatpush.bf16.msra.mxu0 %v1003
    %1534 = vmatpush.bf16.msra.mxu0 %v999
    %1535 = vmatpush.bf16.msra.mxu0 %v995
    %1536 = vmatpush.bf16.msra.mxu0 %v991
    %1537 = vmatpush.bf16.msra.mxu0 %v987
    %1538 = vmatpush.bf16.msra.mxu0 %v983
    %1539 = vmatpush.bf16.msra.mxu0 %v979
    %1540 = vmatpush.bf16.msra.mxu0 %v975
    %1541 = vmatmul.bf16.gmra.mxu0 %v95
    %v1542 = vpop.f32.mrf.mxu0
    %v1543 = vadd.f32 %v1530, %v1542
    %v1544 = vpop.f32.mrf.mxu0
    %1545 = vdwg.mxu0
    %1546 = vmatpush.bf16.msra.mxu0 %v1035
    %1547 = vmatpush.bf16.msra.mxu0 %v1031
    %1548 = vmatpush.bf16.msra.mxu0 %v1027
    %1549 = vmatpush.bf16.msra.mxu0 %v1023
    %1550 = vmatpush.bf16.msra.mxu0 %v1019
    %1551 = vmatpush.bf16.msra.mxu0 %v1015
    %1552 = vmatpush.bf16.msra.mxu0 %v1011
    %1553 = vmatpush.bf16.msra.mxu0 %v1007
    %1554 = vmatmul.bf16.gmra.mxu0 %v96
    %v1555 = vpop.f32.mrf.mxu0
    %v1556 = vadd.f32 %v1543, %v1555
    %v1557 = vpop.f32.mrf.mxu0
    %1558 = vdwg.mxu0
    %1559 = vmatpush.bf16.msra.mxu0 %v1067
    %1560 = vmatpush.bf16.msra.mxu0 %v1063
    %1561 = vmatpush.bf16.msra.mxu0 %v1059
    %1562 = vmatpush.bf16.msra.mxu0 %v1055
    %1563 = vmatpush.bf16.msra.mxu0 %v1051
    %1564 = vmatpush.bf16.msra.mxu0 %v1047
    %1565 = vmatpush.bf16.msra.mxu0 %v1043
    %1566 = vmatpush.bf16.msra.mxu0 %v1039
    %1567 = vmatmul.bf16.gmra.mxu0 %v97
    %v1568 = vpop.f32.mrf.mxu0
    %v1569 = vadd.f32 %v1556, %v1568
    %v1570 = vpop.f32.mrf.mxu0
    %1571 = vdwg.mxu0
    %v1572 = vmax.f32 %v1335, 0.0
    %v1573 = vmax.f32 %v1413, 0.0
    %v1574 = vmax.f32 %v1491, 0.0
    %v1575 = vmax.f32 %v1569, 0.0
    %v1576 = vpack.c.bf16 %v1572, %v1572
    %v1577 = vpack.c.bf16 %v1573, %v1573
    %v1578 = vpack.c.bf16 %v1574, %v1574
    %v1579 = vpack.c.bf16 %v1575, %v1575
    %v1580 = vld [vmem:[#allocation8] sm:$0xf]
    %v1581 = vld [vmem:[#allocation8 + $0x4] sm:$0xf]
    %v1582 = vld [vmem:[#allocation8 + $0x8] sm:$0xf]
    %v1583 = vld [vmem:[#allocation8 + $0xc] sm:$0xf]
    %v1584 = vld [vmem:[#allocation8 + $0x10] sm:$0xf]
    %v1585 = vld [vmem:[#allocation8 + $0x14] sm:$0xf]
    %v1586 = vld [vmem:[#allocation8 + $0x18] sm:$0xf]
    %v1587 = vld [vmem:[#allocation8 + $0x1c] sm:$0xf]
    %v1588 = vld [vmem:[#allocation8 + $0x20] sm:$0xf]
    %v1589 = vld [vmem:[#allocation8 + $0x24] sm:$0xf]
    %v1590 = vld [vmem:[#allocation8 + $0x28] sm:$0xf]
    %v1591 = vld [vmem:[#allocation8 + $0x2c] sm:$0xf]
    %v1592 = vld [vmem:[#allocation8 + $0x30] sm:$0xf]
    %v1593 = vld [vmem:[#allocation8 + $0x34] sm:$0xf]
    %v1594 = vld [vmem:[#allocation8 + $0x38] sm:$0xf]
    %v1595 = vld [vmem:[#allocation8 + $0x3c] sm:$0xf]
    %v1596 = vld [vmem:[#allocation8 + $0x40] sm:$0xf]
    %v1597 = vld [vmem:[#allocation8 + $0x44] sm:$0xf]
    %v1598 = vld [vmem:[#allocation8 + $0x48] sm:$0xf]
    %v1599 = vld [vmem:[#allocation8 + $0x4c] sm:$0xf]
    %v1600 = vld [vmem:[#allocation8 + $0x50] sm:$0xf]
    %v1601 = vld [vmem:[#allocation8 + $0x54] sm:$0xf]
    %v1602 = vld [vmem:[#allocation8 + $0x58] sm:$0xf]
    %v1603 = vld [vmem:[#allocation8 + $0x5c] sm:$0xf]
    %v1604 = vld [vmem:[#allocation8 + $0x60] sm:$0xf]
    %v1605 = vld [vmem:[#allocation8 + $0x64] sm:$0xf]
    %v1606 = vld [vmem:[#allocation8 + $0x68] sm:$0xf]
    %v1607 = vld [vmem:[#allocation8 + $0x6c] sm:$0xf]
    %v1608 = vld [vmem:[#allocation8 + $0x70] sm:$0xf]
    %v1609 = vld [vmem:[#allocation8 + $0x74] sm:$0xf]
    %v1610 = vld [vmem:[#allocation8 + $0x78] sm:$0xf]
    %v1611 = vld [vmem:[#allocation8 + $0x7c] sm:$0xf]
    %v1612 = vld [vmem:[#allocation8 + $0x80] sm:$0xf]
    %v1613 = vld [vmem:[#allocation8 + $0x84] sm:$0xf]
    %v1614 = vld [vmem:[#allocation8 + $0x88] sm:$0xf]
    %v1615 = vld [vmem:[#allocation8 + $0x8c] sm:$0xf]
    %v1616 = vld [vmem:[#allocation8 + $0x90] sm:$0xf]
    %v1617 = vld [vmem:[#allocation8 + $0x94] sm:$0xf]
    %v1618 = vld [vmem:[#allocation8 + $0x98] sm:$0xf]
    %v1619 = vld [vmem:[#allocation8 + $0x9c] sm:$0xf]
    %v1620 = vld [vmem:[#allocation8 + $0xa0] sm:$0xf]
    %v1621 = vld [vmem:[#allocation8 + $0xa4] sm:$0xf]
    %v1622 = vld [vmem:[#allocation8 + $0xa8] sm:$0xf]
    %v1623 = vld [vmem:[#allocation8 + $0xac] sm:$0xf]
    %v1624 = vld [vmem:[#allocation8 + $0xb0] sm:$0xf]
    %v1625 = vld [vmem:[#allocation8 + $0xb4] sm:$0xf]
    %v1626 = vld [vmem:[#allocation8 + $0xb8] sm:$0xf]
    %v1627 = vld [vmem:[#allocation8 + $0xbc] sm:$0xf]
    %v1628 = vld [vmem:[#allocation8 + $0xc0] sm:$0xf]
    %v1629 = vld [vmem:[#allocation8 + $0xc4] sm:$0xf]
    %v1630 = vld [vmem:[#allocation8 + $0xc8] sm:$0xf]
    %v1631 = vld [vmem:[#allocation8 + $0xcc] sm:$0xf]
    %v1632 = vld [vmem:[#allocation8 + $0xd0] sm:$0xf]
    %v1633 = vld [vmem:[#allocation8 + $0xd4] sm:$0xf]
    %v1634 = vld [vmem:[#allocation8 + $0xd8] sm:$0xf]
    %v1635 = vld [vmem:[#allocation8 + $0xdc] sm:$0xf]
    %v1636 = vld [vmem:[#allocation8 + $0xe0] sm:$0xf]
    %v1637 = vld [vmem:[#allocation8 + $0xe4] sm:$0xf]
    %v1638 = vld [vmem:[#allocation8 + $0xe8] sm:$0xf]
    %v1639 = vld [vmem:[#allocation8 + $0xec] sm:$0xf]
    %v1640 = vld [vmem:[#allocation8 + $0xf0] sm:$0xf]
    %v1641 = vld [vmem:[#allocation8 + $0xf4] sm:$0xf]
    %v1642 = vld [vmem:[#allocation8 + $0xf8] sm:$0xf]
    %v1643 = vld [vmem:[#allocation8 + $0xfc] sm:$0xf]
    %v1644 = vld [vmem:[%s4] sm:$0x1]
    %v1646 = vperm.slane %v1644, 0
    %v1712 = vunpack.c.l.b16 %v1580
    %v1713 = vunpack.c.l.b16 %v1581
    %v1714 = vunpack.c.l.b16 %v1582
    %v1715 = vunpack.c.l.b16 %v1583
    %v1716 = vunpack.c.l.b16 %v1584
    %v1717 = vunpack.c.l.b16 %v1585
    %v1718 = vunpack.c.l.b16 %v1586
    %v1719 = vunpack.c.l.b16 %v1587
    %v1720 = vunpack.c.l.b16 %v1588
    %v1721 = vunpack.c.l.b16 %v1589
    %v1722 = vunpack.c.l.b16 %v1590
    %v1723 = vunpack.c.l.b16 %v1591
    %v1724 = vunpack.c.l.b16 %v1592
    %v1725 = vunpack.c.l.b16 %v1593
    %v1726 = vunpack.c.l.b16 %v1594
    %v1727 = vunpack.c.l.b16 %v1595
    %v1728 = vunpack.c.l.b16 %v1596
    %v1729 = vunpack.c.l.b16 %v1597
    %v1730 = vunpack.c.l.b16 %v1598
    %v1731 = vunpack.c.l.b16 %v1599
    %v1732 = vunpack.c.l.b16 %v1600
    %v1733 = vunpack.c.l.b16 %v1601
    %v1734 = vunpack.c.l.b16 %v1602
    %v1735 = vunpack.c.l.b16 %v1603
    %v1736 = vunpack.c.l.b16 %v1604
    %v1737 = vunpack.c.l.b16 %v1605
    %v1738 = vunpack.c.l.b16 %v1606
    %v1739 = vunpack.c.l.b16 %v1607
    %v1740 = vunpack.c.l.b16 %v1608
    %v1741 = vunpack.c.l.b16 %v1609
    %v1742 = vunpack.c.l.b16 %v1610
    %v1743 = vunpack.c.l.b16 %v1611
    %v1744 = vunpack.c.l.b16 %v1612
    %v1745 = vunpack.c.l.b16 %v1613
    %v1746 = vunpack.c.l.b16 %v1614
    %v1747 = vunpack.c.l.b16 %v1615
    %v1748 = vunpack.c.l.b16 %v1616
    %v1749 = vunpack.c.l.b16 %v1617
    %v1750 = vunpack.c.l.b16 %v1618
    %v1751 = vunpack.c.l.b16 %v1619
    %v1752 = vunpack.c.l.b16 %v1620
    %v1753 = vunpack.c.l.b16 %v1621
    %v1754 = vunpack.c.l.b16 %v1622
    %v1755 = vunpack.c.l.b16 %v1623
    %v1756 = vunpack.c.l.b16 %v1624
    %v1757 = vunpack.c.l.b16 %v1625
    %v1758 = vunpack.c.l.b16 %v1626
    %v1759 = vunpack.c.l.b16 %v1627
    %v1760 = vunpack.c.l.b16 %v1628
    %v1761 = vunpack.c.l.b16 %v1629
    %v1762 = vunpack.c.l.b16 %v1630
    %v1763 = vunpack.c.l.b16 %v1631
    %v1764 = vunpack.c.l.b16 %v1632
    %v1765 = vunpack.c.l.b16 %v1633
    %v1766 = vunpack.c.l.b16 %v1634
    %v1767 = vunpack.c.l.b16 %v1635
    %v1768 = vunpack.c.l.b16 %v1636
    %v1769 = vunpack.c.l.b16 %v1637
    %v1770 = vunpack.c.l.b16 %v1638
    %v1771 = vunpack.c.l.b16 %v1639
    %v1772 = vunpack.c.l.b16 %v1640
    %v1773 = vunpack.c.l.b16 %v1641
    %v1774 = vunpack.c.l.b16 %v1642
    %v1775 = vunpack.c.l.b16 %v1643
    %v1776 = vpack.c.b16 %v1713, %v1712
    %v1777 = vpack.c.b16 %v1715, %v1714
    %v1778 = vpack.c.b16 %v1717, %v1716
    %v1779 = vpack.c.b16 %v1719, %v1718
    %v1780 = vpack.c.b16 %v1721, %v1720
    %v1781 = vpack.c.b16 %v1723, %v1722
    %v1782 = vpack.c.b16 %v1725, %v1724
    %v1783 = vpack.c.b16 %v1727, %v1726
    %v1784 = vpack.c.b16 %v1729, %v1728
    %v1785 = vpack.c.b16 %v1731, %v1730
    %v1786 = vpack.c.b16 %v1733, %v1732
    %v1787 = vpack.c.b16 %v1735, %v1734
    %v1788 = vpack.c.b16 %v1737, %v1736
    %v1789 = vpack.c.b16 %v1739, %v1738
    %v1790 = vpack.c.b16 %v1741, %v1740
    %v1791 = vpack.c.b16 %v1743, %v1742
    %v1792 = vpack.c.b16 %v1745, %v1744
    %v1793 = vpack.c.b16 %v1747, %v1746
    %v1794 = vpack.c.b16 %v1749, %v1748
    %v1795 = vpack.c.b16 %v1751, %v1750
    %v1796 = vpack.c.b16 %v1753, %v1752
    %v1797 = vpack.c.b16 %v1755, %v1754
    %v1798 = vpack.c.b16 %v1757, %v1756
    %v1799 = vpack.c.b16 %v1759, %v1758
    %v1800 = vpack.c.b16 %v1761, %v1760
    %v1801 = vpack.c.b16 %v1763, %v1762
    %v1802 = vpack.c.b16 %v1765, %v1764
    %v1803 = vpack.c.b16 %v1767, %v1766
    %v1804 = vpack.c.b16 %v1769, %v1768
    %v1805 = vpack.c.b16 %v1771, %v1770
    %v1806 = vpack.c.b16 %v1773, %v1772
    %v1807 = vpack.c.b16 %v1775, %v1774
    %1840 = vmatpush.bf16.msra.mxu0 %v1783
    %1841 = vmatpush.bf16.msra.mxu0 %v1782
    %1842 = vmatpush.bf16.msra.mxu0 %v1781
    %1843 = vmatpush.bf16.msra.mxu0 %v1780
    %1844 = vmatpush.bf16.msra.mxu0 %v1779
    %1845 = vmatpush.bf16.msra.mxu0 %v1778
    %1846 = vmatpush.bf16.msra.mxu0 %v1777
    %1847 = vmatpush.bf16.msra.mxu0 %v1776
    %1848 = vmatmul.bf16.gmra.mxu0 %v1576
    %v1849 = vpop.f32.mrf.mxu0
    %v1850 = vadd.f32 %v1646, %v1849
    %v1851 = vpop.f32.mrf.mxu0
    %1852 = vdwg.mxu0
    %1853 = vmatpush.bf16.msra.mxu0 %v1791
    %1854 = vmatpush.bf16.msra.mxu0 %v1790
    %1855 = vmatpush.bf16.msra.mxu0 %v1789
    %1856 = vmatpush.bf16.msra.mxu0 %v1788
    %1857 = vmatpush.bf16.msra.mxu0 %v1787
    %1858 = vmatpush.bf16.msra.mxu0 %v1786
    %1859 = vmatpush.bf16.msra.mxu0 %v1785
    %1860 = vmatpush.bf16.msra.mxu0 %v1784
    %1861 = vmatmul.bf16.gmra.mxu0 %v1577
    %v1862 = vpop.f32.mrf.mxu0
    %v1863 = vadd.f32 %v1850, %v1862
    %v1864 = vpop.f32.mrf.mxu0
    %1865 = vdwg.mxu0
    %1866 = vmatpush.bf16.msra.mxu0 %v1799
    %1867 = vmatpush.bf16.msra.mxu0 %v1798
    %1868 = vmatpush.bf16.msra.mxu0 %v1797
    %1869 = vmatpush.bf16.msra.mxu0 %v1796
    %1870 = vmatpush.bf16.msra.mxu0 %v1795
    %1871 = vmatpush.bf16.msra.mxu0 %v1794
    %1872 = vmatpush.bf16.msra.mxu0 %v1793
    %1873 = vmatpush.bf16.msra.mxu0 %v1792
    %1874 = vmatmul.bf16.gmra.mxu0 %v1578
    %v1875 = vpop.f32.mrf.mxu0
    %v1876 = vadd.f32 %v1863, %v1875
    %v1877 = vpop.f32.mrf.mxu0
    %1878 = vdwg.mxu0
    %1879 = vmatpush.bf16.msra.mxu0 %v1807
    %1880 = vmatpush.bf16.msra.mxu0 %v1806
    %1881 = vmatpush.bf16.msra.mxu0 %v1805
    %1882 = vmatpush.bf16.msra.mxu0 %v1804
    %1883 = vmatpush.bf16.msra.mxu0 %v1803
    %1884 = vmatpush.bf16.msra.mxu0 %v1802
    %1885 = vmatpush.bf16.msra.mxu0 %v1801
    %1886 = vmatpush.bf16.msra.mxu0 %v1800
    %1887 = vmatmul.bf16.gmra.mxu0 %v1579
    %v1888 = vpop.f32.mrf.mxu0
    %v1889 = vadd.f32 %v1876, %v1888
    %v1890 = vpop.f32.mrf.mxu0
    %1891 = vdwg.mxu0
    %v1892 = vmax.f32 %v1889, 0.0
    %v1893 = vld [vmem:[%s5] sm:$0x1]
    %v1895 = vperm.slane %v1893, 0
    %v1897 = vmul.f32 %v1892, %v1895
    %1898 = vadd.xlane.f32.xlu0 %v1897
    %v1899 = vpop.xlane.xlu0 %1898
    %s1900 = sld [smem:[#allocation2]]
    %v1901 = vstv %s1900
    %v1902 = vadd.f32 %v1899, %v1901
    %v1903 = vxor.u32 %v1902, 2147483648
    %v1904 = vmul.f32 %v1903, 1.442695
    %v1905 = vpow.pop %v1904
    %v1906 = vadd.f32 %v1905, 1.0
    %v1907 = vrcp.pop %v1906
    %v1908 = vmul.f32 %v1906, %v1907
    %v1909 = vsub.f32 1.0, %v1908
    %v1910 = vmul.f32 %v1907, %v1909
    %v1911 = vadd.f32 %v1907, %v1910
    %vm1912 = vweird.f32 %v1906
    %vm1913 = vweird.f32 %v1907
    %vm1914 = vmor %vm1912, %vm1913
    %v1915 = vsel %vm1914, %v1907, %v1911
    %v1916 = vand.u32 2147483647, %v1906
    %vm1917 = vcmp.eq.f32.partialorder %v1916, 8.507059e+37
    %v1918 = vand.u32 %v1906, 2147483648
    %v1919 = vor.u32 1.1754944e-38, %v1918
    %v1920 = vsel %vm1917, %v1919, %v1915
    %v1921 = vmul.f32 1.0, %v1920
    %vm1922 = vcmask 7168
    %1923 = vst.msk [vmem:[%s7] sm:$0xff] %vm1922, %v1921
    // Predicated region
    $region46: #{tpu_custom_call.1} parent=1 // pred_check
      _
    $region47: #{tpu_custom_call.1} parent=1 // pred_check_branch
      %1925 = sbr.rel (0) target = $region49
    $region48: #{tpu_custom_call.1} parent=1 // pred_region
      _
    $region49: #{tpu_custom_call.1} parent=1 // pred_fallthru
      _
    // Predicated region
    $region50: #{tpu_custom_call.1} parent=1 // pred_check
      _
    $region51: #{tpu_custom_call.1} parent=1 // pred_check_branch
      %1927 = sbr.rel (0) target = $region53
    $region52: #{tpu_custom_call.1} parent=1 // pred_region
      _
    $region53: #{tpu_custom_call.1} parent=1 // pred_fallthru
      _
    %1928 = vsyncpa [#allocation4], 1
    %1929 = vsyncpa [#allocation6], 1
    %1930 = vsyncpa [#allocation9], 1

</llo_original>
